<compile_context>
chip_gen: v7x
topology: tpu7x:2x2x1
jax: 0.10.0
libtpu: 0.0.40
codegen_flags: <defaults>
</compile_context>

<pallas_src>
import functools

import jax
import jax.numpy as jnp
from jax.experimental import pallas as pl
from jax.experimental.pallas import tpu as pltpu


def _mha_kernel(q_ref, k_ref, v_ref, wq_ref, wk_ref, wv_ref, mask_ref,
                wo_ref, bo_ref, o_ref, *, num_heads):
    """Fused per-batch MHA: projections + attention (all heads) + fc_out.

    Ref shapes (leading batch dim squeezed by the BlockSpecs):
      q_ref : (H, q_len, D) f32      wq_ref : (D, D)        bf16 (scale folded in)
      k_ref : (H, k_len, D) f32      wk_ref : (D, k_dim)    bf16
      v_ref : (H, v_len, D) f32      wv_ref : (D, v_dim)    bf16
      mask_ref : (q_len, k_len) i32  wo_ref : (H, v_dim, E) bf16
      bo_ref : (1, E) f32            o_ref  : (q_len, E)    f32
    """
    H = num_heads
    _, q_len, D = q_ref.shape
    k_len = k_ref.shape[1]
    v_len = v_ref.shape[1]
    kd = wk_ref.shape[1]
    vd = wv_ref.shape[1]
    E = wo_ref.shape[-1]

    # --- Q/K/V projections: heads folded into the M dimension ---------------
    # One (H*L, D) @ (D, out) matmul per tensor (bf16 operands, f32 accumulate).
    qp = jnp.dot(q_ref[...].reshape(H * q_len, D).astype(jnp.bfloat16),
                 wq_ref[...], preferred_element_type=jnp.float32)
    kp = jnp.dot(k_ref[...].reshape(H * k_len, D).astype(jnp.bfloat16),
                 wk_ref[...], preferred_element_type=jnp.float32)
    vp = jnp.dot(v_ref[...].reshape(H * v_len, D).astype(jnp.bfloat16),
                 wv_ref[...], preferred_element_type=jnp.float32)
    qh = qp.reshape(H, q_len, D).astype(jnp.bfloat16)
    kh = kp.reshape(H, k_len, kd).astype(jnp.bfloat16)
    vh = vp.reshape(H, v_len, vd).astype(jnp.bfloat16)

    # --- attention: all heads batched in one einsum --------------------------
    energy = jnp.einsum('hqd,hkd->hqk', qh, kh,
                        preferred_element_type=jnp.float32)       # (H, q, k)

    masked_out = mask_ref[...] == 0                 # integer mask, hoisted once
    energy = jnp.where(masked_out[None, :, :], jnp.float32(-1e20), energy)

    # numerically stable softmax in f32; the divide goes to the EUP slot.
    mx = jnp.max(energy, axis=-1, keepdims=True)
    p = jnp.exp(energy - mx)
    denom = jnp.sum(p, axis=-1, keepdims=True)
    attn = p * pl.reciprocal(denom, approx=True)

    ctx = jnp.einsum('hqk,hkd->hqd', attn.astype(jnp.bfloat16), vh,
                     preferred_element_type=jnp.float32)          # (H, q, vd)

    # --- fused fc_out: out = bias + sum_h ctx[h] @ Wout.T[h*vd:(h+1)*vd, :] --
    out = jnp.broadcast_to(bo_ref[...], (q_len, E)).astype(jnp.float32)
    for h in range(H):                                            # static unroll
        out = out + jnp.dot(ctx[h].astype(jnp.bfloat16), wo_ref[h],
                            preferred_element_type=jnp.float32)
    o_ref[...] = out


def multi_head_attention(values, keys, queries, mask, params, *,
                         embed_dim, num_heads):
    """Forward pass matching the PyTorch MultiHeadAttention module.

    values/keys/queries: (n, seq, embed_dim) f32; mask: (n, 1, q_len, k_len).
    params = (wv, wk, wq, w_out, b_out) in PyTorch Linear layout (out, in).
    """
    n, q_len, _ = queries.shape
    k_len = keys.shape[1]
    v_len = values.shape[1]
    H = num_heads
    D = embed_dim // num_heads
    E = embed_dim
    wv, wk, wq, w_out, b_out = params
    kd = wk.shape[0]        # k_dim
    vd = wv.shape[0]        # v_dim

    # ---- layout glue only: split heads -> (n, H, L, D) ----------------------
    def split_heads(x, L):
        return x.reshape(n, L, H, D).transpose(0, 2, 1, 3)

    q4 = split_heads(queries, q_len)
    k4 = split_heads(keys, k_len)
    v4 = split_heads(values, v_len)

    # Weights pre-transposed to (in, out); bf16 MXU operands (f32 accumulate
    # happens in-kernel).  The 1/sqrt(E) softmax scale is folded into the
    # query weight (tiny constant, folded by XLA).  The fc_out weight is
    # reshaped (metadata-only) to per-head (H, vd, E) slabs so the kernel
    # accumulates heads directly into the (q_len, E) output.
    inv_scale = 1.0 / float(embed_dim) ** 0.5
    wq_t = (wq.T * inv_scale).astype(jnp.bfloat16)    # (D, D)
    wk_t = wk.T.astype(jnp.bfloat16)                  # (D, kd)
    wv_t = wv.T.astype(jnp.bfloat16)                  # (D, vd)
    wo_h = w_out.T.reshape(H, vd, E).astype(jnp.bfloat16)
    b_o = b_out.reshape(1, E).astype(jnp.float32)

    # Integer mask (1 = keep, 0 = mask out): robust integer equality in-kernel,
    # head-independent DMA (the broadcast head dim is squeezed by the spec).
    mask_i = (mask != 0).astype(jnp.int32)

    return pl.pallas_call(
        functools.partial(_mha_kernel, num_heads=H),
        out_shape=jax.ShapeDtypeStruct((n, q_len, E), jnp.float32),
        grid=(n,),
        in_specs=[
            pl.BlockSpec((None, H, q_len, D), lambda b: (b, 0, 0, 0)),
            pl.BlockSpec((None, H, k_len, D), lambda b: (b, 0, 0, 0)),
            pl.BlockSpec((None, H, v_len, D), lambda b: (b, 0, 0, 0)),
            pl.BlockSpec((D, D), lambda b: (0, 0)),
            pl.BlockSpec((D, kd), lambda b: (0, 0)),
            pl.BlockSpec((D, vd), lambda b: (0, 0)),
            pl.BlockSpec((None, None, q_len, k_len), lambda b: (b, 0, 0, 0)),
            pl.BlockSpec((H, vd, E), lambda b: (0, 0, 0)),
            pl.BlockSpec((1, E), lambda b: (0, 0)),
        ],
        out_specs=pl.BlockSpec((None, q_len, E), lambda b: (b, 0, 0)),
        compiler_params=pltpu.CompilerParams(
            dimension_semantics=("parallel",)),
    )(q4, k4, v4, wq_t, wk_t, wv_t, mask_i, wo_h, b_o)


def reference(values, keys, queries, mask, params, embed_dim, num_heads):
    """Pure-JAX transcription of the PyTorch forward (f32)."""
    n, q_len, _ = queries.shape
    head_dim = embed_dim // num_heads
    wv, wk, wq, w_out, b_out = params
    v = values.reshape(n, -1, num_heads, head_dim)
    k = keys.reshape(n, -1, num_heads, head_dim)
    q = queries.reshape(n, -1, num_heads, head_dim)
    v = jnp.einsum('nlhd,ed->nlhe', v, wv)
    k = jnp.einsum('nlhd,ed->nlhe', k, wk)
    q = jnp.einsum('nlhd,ed->nlhe', q, wq)
    energy = jnp.einsum('nqhd,nkhd->nhqk', q, k)
    energy = jnp.where(mask == 0, jnp.float32(-1e20), energy)
    attn = jax.nn.softmax(energy / embed_dim ** 0.5, axis=3)
    out = jnp.einsum('nhql,nlhd->nqhd', attn, v).reshape(
        n, q_len, num_heads * head_dim)
    return out @ w_out.T + b_out


if __name__ == "__main__":
    embed_dim, num_heads = 32, 4
    head_dim = embed_dim // num_heads      # 8
    n, seq = 2, 8
    # k_dim = v_dim = head_dim (required for the module's einsums to be valid)

    key = jax.random.PRNGKey(0)
    ks = jax.random.split(key, 8)
    values_in = jax.random.normal(ks[0], (n, seq, embed_dim), jnp.float32)
    keys_in = jax.random.normal(ks[1], (n, seq, embed_dim), jnp.float32)
    queries_in = jax.random.normal(ks[2], (n, seq, embed_dim), jnp.float32)
    mask = jnp.broadcast_to(
        jnp.tril(jnp.ones((seq, seq), jnp.float32))[None, None],
        (n, 1, seq, seq))

    # Deterministic parameter init (uniform, PyTorch-Linear-like ranges).
    s = 1.0 / head_dim ** 0.5
    wv = jax.random.uniform(ks[3], (head_dim, head_dim), jnp.float32, -s, s)
    wk = jax.random.uniform(ks[4], (head_dim, head_dim), jnp.float32, -s, s)
    wq = jax.random.uniform(ks[5], (head_dim, head_dim), jnp.float32, -s, s)
    so = 1.0 / embed_dim ** 0.5
    w_out = jax.random.uniform(ks[6], (embed_dim, embed_dim), jnp.float32, -so, so)
    b_out = jax.random.uniform(ks[7], (embed_dim,), jnp.float32, -so, so)
    params = (wv, wk, wq, w_out, b_out)

    out = multi_head_attention(values_in, keys_in, queries_in, mask, params,
                               embed_dim=embed_dim, num_heads=num_heads)
    out = jax.block_until_ready(out)

    ref = reference(values_in, keys_in, queries_in, mask, params,
                    embed_dim, num_heads)
    assert out.shape == (n, seq, embed_dim)
    assert jnp.allclose(out, ref, rtol=2e-2, atol=2e-2), \
        float(jnp.max(jnp.abs(out - ref)))
    print("KERNEL_OK")
</pallas_src>

<mosaic_0001>
module attributes {stable_mosaic.version = 11 : i64} {
  func.func @_mha_kernel(%arg0: i32, %arg1: memref<1x4x8x8xf32, #tpu.memory_space<vmem>>, %arg2: memref<1x4x8x8xf32, #tpu.memory_space<vmem>>, %arg3: memref<1x4x8x8xf32, #tpu.memory_space<vmem>>, %arg4: memref<8x8xbf16, #tpu.memory_space<vmem>>, %arg5: memref<8x8xbf16, #tpu.memory_space<vmem>>, %arg6: memref<8x8xbf16, #tpu.memory_space<vmem>>, %arg7: memref<1x1x8x8xi32, #tpu.memory_space<vmem>>, %arg8: memref<4x8x32xbf16, #tpu.memory_space<vmem>>, %arg9: memref<1x32xf32, #tpu.memory_space<vmem>>, %arg10: memref<1x8x32xf32, #tpu.memory_space<vmem>>) attributes {dimension_semantics = [#tpu.dimension_semantics<parallel>], iteration_bounds = array<i64: 2>, scalar_prefetch = 0 : i64, scratch_operands = 0 : i64, tpu.core_type = #tpu.core_type<tc>, window_params = [{transform_indices = @transform_0, window_bounds = array<i64: 1, 4, 8, 8>}, {transform_indices = @transform_1, window_bounds = array<i64: 1, 4, 8, 8>}, {transform_indices = @transform_2, window_bounds = array<i64: 1, 4, 8, 8>}, {pipeline_mode = #tpu.pipeline_mode<synchronous>, transform_indices = @transform_3, window_bounds = array<i64: 8, 8>}, {pipeline_mode = #tpu.pipeline_mode<synchronous>, transform_indices = @transform_4, window_bounds = array<i64: 8, 8>}, {pipeline_mode = #tpu.pipeline_mode<synchronous>, transform_indices = @transform_5, window_bounds = array<i64: 8, 8>}, {transform_indices = @transform_6, window_bounds = array<i64: 1, 1, 8, 8>}, {pipeline_mode = #tpu.pipeline_mode<synchronous>, transform_indices = @transform_7, window_bounds = array<i64: 4, 8, 32>}, {pipeline_mode = #tpu.pipeline_mode<synchronous>, transform_indices = @transform_8, window_bounds = array<i64: 1, 32>}, {transform_indices = @transform_9, window_bounds = array<i64: 1, 8, 32>}]} {
    %c0 = arith.constant 0 : index
    %c0_0 = arith.constant 0 : index
    %c0_1 = arith.constant 0 : index
    %c0_2 = arith.constant 0 : index
    %0 = vector.load %arg1[%c0, %c0_0, %c0_1, %c0_2] : memref<1x4x8x8xf32, #tpu.memory_space<vmem>>, vector<1x4x8x8xf32>
    %1 = vector.shape_cast %0 : vector<1x4x8x8xf32> to vector<4x8x8xf32>
    %2 = vector.shape_cast %1 : vector<4x8x8xf32> to vector<32x8xf32>
    %3 = arith.truncf %2 : vector<32x8xf32> to vector<32x8xbf16>
    %c0_3 = arith.constant 0 : index
    %c0_4 = arith.constant 0 : index
    %4 = vector.load %arg4[%c0_3, %c0_4] : memref<8x8xbf16, #tpu.memory_space<vmem>>, vector<8x8xbf16>
    %cst = arith.constant dense<0.000000e+00> : vector<32x8xf32>
    %5 = tpu.matmul %3, %4, %cst {dimension_numbers = #tpu.dot_dimension_numbers<[1], [0], [0], [1], [0, 0, 1, 1], [], []>} : vector<32x8xbf16>, vector<8x8xbf16>, vector<32x8xf32> -> vector<32x8xf32>
    %c0_5 = arith.constant 0 : index
    %c0_6 = arith.constant 0 : index
    %c0_7 = arith.constant 0 : index
    %c0_8 = arith.constant 0 : index
    %6 = vector.load %arg2[%c0_5, %c0_6, %c0_7, %c0_8] : memref<1x4x8x8xf32, #tpu.memory_space<vmem>>, vector<1x4x8x8xf32>
    %7 = vector.shape_cast %6 : vector<1x4x8x8xf32> to vector<4x8x8xf32>
    %8 = vector.shape_cast %7 : vector<4x8x8xf32> to vector<32x8xf32>
    %9 = arith.truncf %8 : vector<32x8xf32> to vector<32x8xbf16>
    %c0_9 = arith.constant 0 : index
    %c0_10 = arith.constant 0 : index
    %10 = vector.load %arg5[%c0_9, %c0_10] : memref<8x8xbf16, #tpu.memory_space<vmem>>, vector<8x8xbf16>
    %cst_11 = arith.constant dense<0.000000e+00> : vector<32x8xf32>
    %11 = tpu.matmul %9, %10, %cst_11 {dimension_numbers = #tpu.dot_dimension_numbers<[1], [0], [0], [1], [0, 0, 1, 1], [], []>} : vector<32x8xbf16>, vector<8x8xbf16>, vector<32x8xf32> -> vector<32x8xf32>
    %c0_12 = arith.constant 0 : index
    %c0_13 = arith.constant 0 : index
    %c0_14 = arith.constant 0 : index
    %c0_15 = arith.constant 0 : index
    %12 = vector.load %arg3[%c0_12, %c0_13, %c0_14, %c0_15] : memref<1x4x8x8xf32, #tpu.memory_space<vmem>>, vector<1x4x8x8xf32>
    %13 = vector.shape_cast %12 : vector<1x4x8x8xf32> to vector<4x8x8xf32>
    %14 = vector.shape_cast %13 : vector<4x8x8xf32> to vector<32x8xf32>
    %15 = arith.truncf %14 : vector<32x8xf32> to vector<32x8xbf16>
    %c0_16 = arith.constant 0 : index
    %c0_17 = arith.constant 0 : index
    %16 = vector.load %arg6[%c0_16, %c0_17] : memref<8x8xbf16, #tpu.memory_space<vmem>>, vector<8x8xbf16>
    %cst_18 = arith.constant dense<0.000000e+00> : vector<32x8xf32>
    %17 = tpu.matmul %15, %16, %cst_18 {dimension_numbers = #tpu.dot_dimension_numbers<[1], [0], [0], [1], [0, 0, 1, 1], [], []>} : vector<32x8xbf16>, vector<8x8xbf16>, vector<32x8xf32> -> vector<32x8xf32>
    %18 = vector.shape_cast %5 : vector<32x8xf32> to vector<4x8x8xf32>
    %19 = arith.truncf %18 : vector<4x8x8xf32> to vector<4x8x8xbf16>
    %20 = vector.shape_cast %11 : vector<32x8xf32> to vector<4x8x8xf32>
    %21 = arith.truncf %20 : vector<4x8x8xf32> to vector<4x8x8xbf16>
    %22 = vector.shape_cast %17 : vector<32x8xf32> to vector<4x8x8xf32>
    %23 = arith.truncf %22 : vector<4x8x8xf32> to vector<4x8x8xbf16>
    "tpu.trace_start"() <{level = 10 : i32, message = "hqd,hkd->hqk"}> : () -> ()
    %cst_19 = arith.constant dense<0.000000e+00> : vector<4x8x8xf32>
    %24 = tpu.matmul %19, %21, %cst_19 {dimension_numbers = #tpu.dot_dimension_numbers<[2], [2], [1], [1], [0, 0, 0, 1, 1, 1], [0], [0]>} : vector<4x8x8xbf16>, vector<4x8x8xbf16>, vector<4x8x8xf32> -> vector<4x8x8xf32>
    "tpu.trace_stop"() : () -> ()
    %c0_20 = arith.constant 0 : index
    %c0_21 = arith.constant 0 : index
    %c0_22 = arith.constant 0 : index
    %c0_23 = arith.constant 0 : index
    %25 = vector.load %arg7[%c0_20, %c0_21, %c0_22, %c0_23] : memref<1x1x8x8xi32, #tpu.memory_space<vmem>>, vector<1x1x8x8xi32>
    %26 = vector.shape_cast %25 : vector<1x1x8x8xi32> to vector<8x8xi32>
    %c0_i32 = arith.constant 0 : i32
    %27 = vector.broadcast %c0_i32 : i32 to vector<8x8xi32>
    %28 = arith.cmpi eq, %26, %27 : vector<8x8xi32>
    %29 = vector.shape_cast %28 : vector<8x8xi1> to vector<1x8x8xi1>
    %cst_24 = arith.constant -1.000000e+20 : f32
    %30 = vector.shape_cast %29 : vector<1x8x8xi1> to vector<1x8x8xi1>
    %31 = vector.broadcast %30 : vector<1x8x8xi1> to vector<4x8x8xi1>
    %32 = vector.broadcast %cst_24 : f32 to vector<4x8x8xf32>
    %33 = arith.select %31, %32, %24 : vector<4x8x8xi1>, vector<4x8x8xf32>
    %cst_25 = arith.constant dense<0xFF800000> : vector<4x8xf32>
    %34 = vector.multi_reduction <maximumf>, %33, %cst_25 [2] : vector<4x8x8xf32> to vector<4x8xf32>
    %35 = vector.shape_cast %34 : vector<4x8xf32> to vector<4x8x1xf32>
    %36 = vector.broadcast %35 : vector<4x8x1xf32> to vector<4x8x8xf32>
    %37 = arith.subf %33, %36 : vector<4x8x8xf32>
    %38 = math.exp %37 : vector<4x8x8xf32>
    %cst_26 = arith.constant dense<0.000000e+00> : vector<4x8xf32>
    %39 = vector.multi_reduction <add>, %38, %cst_26 [2] : vector<4x8x8xf32> to vector<4x8xf32>
    %40 = vector.shape_cast %39 : vector<4x8xf32> to vector<4x8x1xf32>
    %41 = tpu.reciprocal %40 {approx = true} : vector<4x8x1xf32> -> vector<4x8x1xf32>
    %42 = vector.broadcast %41 : vector<4x8x1xf32> to vector<4x8x8xf32>
    %43 = arith.mulf %38, %42 : vector<4x8x8xf32>
    %44 = arith.truncf %43 : vector<4x8x8xf32> to vector<4x8x8xbf16>
    "tpu.trace_start"() <{level = 10 : i32, message = "hqk,hkd->hqd"}> : () -> ()
    %cst_27 = arith.constant dense<0.000000e+00> : vector<4x8x8xf32>
    %45 = tpu.matmul %44, %23, %cst_27 {dimension_numbers = #tpu.dot_dimension_numbers<[2], [1], [1], [2], [0, 0, 0, 1, 1, 2], [0], [0]>} : vector<4x8x8xbf16>, vector<4x8x8xbf16>, vector<4x8x8xf32> -> vector<4x8x8xf32>
    "tpu.trace_stop"() : () -> ()
    %c0_28 = arith.constant 0 : index
    %c0_29 = arith.constant 0 : index
    %46 = vector.load %arg9[%c0_28, %c0_29] : memref<1x32xf32, #tpu.memory_space<vmem>>, vector<1x32xf32>
    %47 = vector.shape_cast %46 : vector<1x32xf32> to vector<1x32xf32>
    %48 = vector.broadcast %47 : vector<1x32xf32> to vector<8x32xf32>
    %49 = vector.extract_strided_slice %45 {offsets = [0, 0, 0], sizes = [1, 8, 8], strides = [1, 1, 1]} : vector<4x8x8xf32> to vector<1x8x8xf32>
    %50 = vector.shape_cast %49 : vector<1x8x8xf32> to vector<8x8xf32>
    %51 = arith.truncf %50 : vector<8x8xf32> to vector<8x8xbf16>
    %c0_30 = arith.constant 0 : index
    %c0_31 = arith.constant 0 : index
    %c0_32 = arith.constant 0 : index
    %52 = vector.load %arg8[%c0_30, %c0_31, %c0_32] : memref<4x8x32xbf16, #tpu.memory_space<vmem>>, vector<1x8x32xbf16>
    %53 = vector.shape_cast %52 : vector<1x8x32xbf16> to vector<8x32xbf16>
    %cst_33 = arith.constant dense<0.000000e+00> : vector<8x32xf32>
    %54 = tpu.matmul %51, %53, %cst_33 {dimension_numbers = #tpu.dot_dimension_numbers<[1], [0], [0], [1], [0, 0, 1, 1], [], []>} : vector<8x8xbf16>, vector<8x32xbf16>, vector<8x32xf32> -> vector<8x32xf32>
    %55 = arith.addf %48, %54 : vector<8x32xf32>
    %56 = vector.extract_strided_slice %45 {offsets = [1, 0, 0], sizes = [1, 8, 8], strides = [1, 1, 1]} : vector<4x8x8xf32> to vector<1x8x8xf32>
    %57 = vector.shape_cast %56 : vector<1x8x8xf32> to vector<8x8xf32>
    %58 = arith.truncf %57 : vector<8x8xf32> to vector<8x8xbf16>
    %c1 = arith.constant 1 : index
    %c0_34 = arith.constant 0 : index
    %c0_35 = arith.constant 0 : index
    %59 = vector.load %arg8[%c1, %c0_34, %c0_35] : memref<4x8x32xbf16, #tpu.memory_space<vmem>>, vector<1x8x32xbf16>
    %60 = vector.shape_cast %59 : vector<1x8x32xbf16> to vector<8x32xbf16>
    %cst_36 = arith.constant dense<0.000000e+00> : vector<8x32xf32>
    %61 = tpu.matmul %58, %60, %cst_36 {dimension_numbers = #tpu.dot_dimension_numbers<[1], [0], [0], [1], [0, 0, 1, 1], [], []>} : vector<8x8xbf16>, vector<8x32xbf16>, vector<8x32xf32> -> vector<8x32xf32>
    %62 = arith.addf %55, %61 : vector<8x32xf32>
    %63 = vector.extract_strided_slice %45 {offsets = [2, 0, 0], sizes = [1, 8, 8], strides = [1, 1, 1]} : vector<4x8x8xf32> to vector<1x8x8xf32>
    %64 = vector.shape_cast %63 : vector<1x8x8xf32> to vector<8x8xf32>
    %65 = arith.truncf %64 : vector<8x8xf32> to vector<8x8xbf16>
    %c2 = arith.constant 2 : index
    %c0_37 = arith.constant 0 : index
    %c0_38 = arith.constant 0 : index
    %66 = vector.load %arg8[%c2, %c0_37, %c0_38] : memref<4x8x32xbf16, #tpu.memory_space<vmem>>, vector<1x8x32xbf16>
    %67 = vector.shape_cast %66 : vector<1x8x32xbf16> to vector<8x32xbf16>
    %cst_39 = arith.constant dense<0.000000e+00> : vector<8x32xf32>
    %68 = tpu.matmul %65, %67, %cst_39 {dimension_numbers = #tpu.dot_dimension_numbers<[1], [0], [0], [1], [0, 0, 1, 1], [], []>} : vector<8x8xbf16>, vector<8x32xbf16>, vector<8x32xf32> -> vector<8x32xf32>
    %69 = arith.addf %62, %68 : vector<8x32xf32>
    %70 = vector.extract_strided_slice %45 {offsets = [3, 0, 0], sizes = [1, 8, 8], strides = [1, 1, 1]} : vector<4x8x8xf32> to vector<1x8x8xf32>
    %71 = vector.shape_cast %70 : vector<1x8x8xf32> to vector<8x8xf32>
    %72 = arith.truncf %71 : vector<8x8xf32> to vector<8x8xbf16>
    %c3 = arith.constant 3 : index
    %c0_40 = arith.constant 0 : index
    %c0_41 = arith.constant 0 : index
    %73 = vector.load %arg8[%c3, %c0_40, %c0_41] : memref<4x8x32xbf16, #tpu.memory_space<vmem>>, vector<1x8x32xbf16>
    %74 = vector.shape_cast %73 : vector<1x8x32xbf16> to vector<8x32xbf16>
    %cst_42 = arith.constant dense<0.000000e+00> : vector<8x32xf32>
    %75 = tpu.matmul %72, %74, %cst_42 {dimension_numbers = #tpu.dot_dimension_numbers<[1], [0], [0], [1], [0, 0, 1, 1], [], []>} : vector<8x8xbf16>, vector<8x32xbf16>, vector<8x32xf32> -> vector<8x32xf32>
    %76 = arith.addf %69, %75 : vector<8x32xf32>
    %c0_43 = arith.constant 0 : index
    %c0_44 = arith.constant 0 : index
    %c0_45 = arith.constant 0 : index
    %77 = vector.load %arg10[%c0_43, %c0_44, %c0_45] : memref<1x8x32xf32, #tpu.memory_space<vmem>>, vector<1x8x32xf32>
    %78 = vector.shape_cast %77 : vector<1x8x32xf32> to vector<8x32xf32>
    %79 = vector.shape_cast %76 : vector<8x32xf32> to vector<1x8x32xf32>
    tpu.vector_store %arg10[%c0_43, %c0_44, %c0_45], %79 {strides = array<i32>} : memref<1x8x32xf32, #tpu.memory_space<vmem>>, vector<1x8x32xf32>,
    return
  }
  func.func @transform_0(%arg0: i32) -> (i32, i32, i32, i32) {
    %c0_i32 = arith.constant 0 : i32
    %c0_i32_0 = arith.constant 0 : i32
    %c0_i32_1 = arith.constant 0 : i32
    %c0_i32_2 = arith.constant 0 : i32
    return %arg0, %c0_i32, %c0_i32_0, %c0_i32_1 : i32, i32, i32, i32
  }
  func.func @transform_1(%arg0: i32) -> (i32, i32, i32, i32) {
    %c0_i32 = arith.constant 0 : i32
    %c0_i32_0 = arith.constant 0 : i32
    %c0_i32_1 = arith.constant 0 : i32
    %c0_i32_2 = arith.constant 0 : i32
    return %arg0, %c0_i32, %c0_i32_0, %c0_i32_1 : i32, i32, i32, i32
  }
  func.func @transform_2(%arg0: i32) -> (i32, i32, i32, i32) {
    %c0_i32 = arith.constant 0 : i32
    %c0_i32_0 = arith.constant 0 : i32
    %c0_i32_1 = arith.constant 0 : i32
    %c0_i32_2 = arith.constant 0 : i32
    return %arg0, %c0_i32, %c0_i32_0, %c0_i32_1 : i32, i32, i32, i32
  }
  func.func @transform_3(%arg0: i32) -> (i32, i32) {
    %c0_i32 = arith.constant 0 : i32
    %c0_i32_0 = arith.constant 0 : i32
    %c0_i32_1 = arith.constant 0 : i32
    return %c0_i32, %c0_i32_0 : i32, i32
  }
  func.func @transform_4(%arg0: i32) -> (i32, i32) {
    %c0_i32 = arith.constant 0 : i32
    %c0_i32_0 = arith.constant 0 : i32
    %c0_i32_1 = arith.constant 0 : i32
    return %c0_i32, %c0_i32_0 : i32, i32
  }
  func.func @transform_5(%arg0: i32) -> (i32, i32) {
    %c0_i32 = arith.constant 0 : i32
    %c0_i32_0 = arith.constant 0 : i32
    %c0_i32_1 = arith.constant 0 : i32
    return %c0_i32, %c0_i32_0 : i32, i32
  }
  func.func @transform_6(%arg0: i32) -> (i32, i32, i32, i32) {
    %c0_i32 = arith.constant 0 : i32
    %c0_i32_0 = arith.constant 0 : i32
    %c0_i32_1 = arith.constant 0 : i32
    %c0_i32_2 = arith.constant 0 : i32
    return %arg0, %c0_i32, %c0_i32_0, %c0_i32_1 : i32, i32, i32, i32
  }
  func.func @transform_7(%arg0: i32) -> (i32, i32, i32) {
    %c0_i32 = arith.constant 0 : i32
    %c0_i32_0 = arith.constant 0 : i32
    %c0_i32_1 = arith.constant 0 : i32
    %c0_i32_2 = arith.constant 0 : i32
    return %c0_i32, %c0_i32_0, %c0_i32_1 : i32, i32, i32
  }
  func.func @transform_8(%arg0: i32) -> (i32, i32) {
    %c0_i32 = arith.constant 0 : i32
    %c0_i32_0 = arith.constant 0 : i32
    %c0_i32_1 = arith.constant 0 : i32
    return %c0_i32, %c0_i32_0 : i32, i32
  }
  func.func @transform_9(%arg0: i32) -> (i32, i32, i32) {
    %c0_i32 = arith.constant 0 : i32
    %c0_i32_0 = arith.constant 0 : i32
    %c0_i32_1 = arith.constant 0 : i32
    return %arg0, %c0_i32, %c0_i32_0 : i32, i32, i32
  }
}

</mosaic_0001>

<llo_original>
// kernel: tpu_custom_call.1
$region0: #{tpu_custom_call.1}
  #allocation0 [shape = 'u32[]', space=smem, size = 0x4, offset = 0x4, fixed_abs, tag = 'smem constant byte address 0x4 - core index']
  #allocation1 [shape = 'u32[144,128]{1,0:T(1,128)}', space=vmem, size = 0x12000, scoped, tag = 'internal scratch']
  %s0 = inlined_call_operand.hbm [shape: f32[2,4,8,8], index: 0, kind: input, shape index: {}]
  %s1 = inlined_call_operand.hbm [shape: f32[2,4,8,8], index: 1, kind: input, shape index: {}]
  %s2 = inlined_call_operand.hbm [shape: f32[2,4,8,8], index: 2, kind: input, shape index: {}]
  %s3 = inlined_call_operand.vmem [shape: bf16[8,8], index: 3, kind: input, shape index: {}]
  %s4 = inlined_call_operand.hbm [shape: bf16[8,8], index: 4, kind: input, shape index: {}]
  %s5 = inlined_call_operand.hbm [shape: bf16[8,8], index: 5, kind: input, shape index: {}]
  %s6 = inlined_call_operand.vmem [shape: s32[2,1,8,8], index: 6, kind: input, shape index: {}]
  %s7 = inlined_call_operand.hbm [shape: bf16[4,8,32], index: 7, kind: input, shape index: {}]
  %s8 = inlined_call_operand.vmem [shape: f32[1,32], index: 8, kind: input, shape index: {}]
  %s9 = inlined_call_operand.hbm [shape: f32[2,8,32], index: 9, kind: output, shape index: {}]
  %s10 = sld [smem:[#allocation0]]
  $region93: #{tpu_custom_call.1} parent=0
    _
  %s12 = ssub.s32 1, %s10
  %s13 = scalar_select 0, %s12, %s10
  $region1: #{tpu_custom_call.1} parent=0
    #allocation2 [shape = 'u8[32768]{0}', space=vmem, size = 0x8000, scoped, tag = 'input window, operand 0']
    #allocation3 [shape = 's32[2]{0}', space=sflag, size = 0x8, scoped, tag = 'scoped memory for tpu_custom_call.1']
    #allocation4 [shape = 's32[2]{0}', space=sflag, size = 0x8, scoped, tag = 'scoped memory for tpu_custom_call.1']
    #allocation5 [shape = 'u8[32768]{0}', space=vmem, size = 0x8000, scoped, tag = 'input window, operand 1']
    #allocation6 [shape = 's32[2]{0}', space=sflag, size = 0x8, scoped, tag = 'scoped memory for tpu_custom_call.1']
    #allocation7 [shape = 'u8[32768]{0}', space=vmem, size = 0x8000, scoped, tag = 'input window, operand 2']
    #allocation8 [shape = 'u8[2048]{0}', space=vmem, size = 0x800, scoped, tag = 'input window, operand 4, single buffered']
    #allocation9 [shape = 's32[1]{0}', space=sflag, size = 0x4, scoped, tag = 'scoped memory for tpu_custom_call.1']
    #allocation10 [shape = 'u8[2048]{0}', space=vmem, size = 0x800, scoped, tag = 'input window, operand 5, single buffered']
    #allocation11 [shape = 'u8[8192]{0}', space=vmem, size = 0x2000, scoped, tag = 'input window, operand 7, single buffered']
    #allocation12 [shape = 's32[1]{0}', space=sflag, size = 0x4, scoped, tag = 'scoped memory for tpu_custom_call.1']
    #allocation13 [shape = 'u8[8192]{0}', space=vmem, size = 0x2000, scoped, tag = 'output window, operand 0']
    %14 = vsyncpa [#allocation3], 0
    %s15 = scalar_lea.sflag [#allocation3], 1
    %16 = vsyncpa %s15, 0
    %17 = vsyncpa [#allocation6], 0
    %s18 = scalar_lea.sflag [#allocation6], 1
    %19 = vsyncpa %s18, 0
    %20 = vsyncpa [#allocation9], 0
    %21 = vsyncpa [#allocation12], 0
    %22 = vsyncpa [#allocation4], 0
    %s23 = scalar_lea.sflag [#allocation4], 1
    %24 = vsyncpa %s23, 0
    loop: start=0, step=1, limit=4
    $region2: #{tpu_custom_call.1} parent=1 // loop_pre_header
      _
    $region3: #{tpu_custom_call.1} parent=1 // loop_header
      %s26 = sphi 0, %s30
      %p27 = scmp.ge.s32.totalorder %s26, 4
      %s36 = sphi 0, %s38
      %s39 = sphi 0, %s36
      %s40 = sphi 0, %s39
      %s56 = sphi 0, %s40
      %s62 = sphi 0, %s64
      %s65 = sphi 0, %s62
      %s66 = sphi 0, %s65
      %s82 = sphi 0, %s66
      %s88 = sphi 0, %s90
      %s91 = sphi 0, %s88
      %s92 = sphi 0, %s91
      %s108 = sphi 0, %s92
      %s112 = sphi 0, %s112
      %s114 = sphi 0, %s112
      %s115 = sphi 0, %s114
      %s129 = sphi 0, %s115
      %s133 = sphi 0, %s133
      %s135 = sphi 0, %s133
      %s136 = sphi 0, %s135
      %s150 = sphi 0, %s136
      %s154 = sphi 0, %s154
      %s156 = sphi 0, %s154
      %s157 = sphi 0, %s156
      %s171 = sphi 0, %s157
      %s177 = sphi 0, %s179
      %s180 = sphi 0, %s177
      %s181 = sphi 0, %s180
      %s197 = sphi 0, %s181
      %s201 = sphi 0, %s201
      %s203 = sphi 0, %s201
      %s204 = sphi 0, %s203
      %s218 = sphi 0, %s204
      %s222 = sphi 0, %s222
      %s224 = sphi 0, %s222
      %s225 = sphi 0, %s224
      %s239 = sphi 0, %s225
      %s245 = sphi 0, %s247
      %s248 = sphi 0, %s245
      %s249 = sphi 0, %s248
      %s265 = sphi 0, %s249
    $region4: #{tpu_custom_call.1} parent=1 // loop_header_branch
      %29 = sbr.rel (%p27) target = $region8
    $region5: #{tpu_custom_call.1} parent=1 // loop_body
      %s31 = ssub.s32 %s26, 1
      %s32 = ssub.s32 %s26, 2
      %s33 = sadd.s32 %s26, 1
      %s34 = ssub.s32 %s26, %s33
      %p35 = scmp.eq.s32.totalorder %s34, 0
      %s37 = sadd.s32 %s36, 1
      %s38 = scalar_select %p35, %s36, %s37
      %p41 = pneg %p35
      %p42 = scmp.eq.s32.totalorder %s26, 1
      %p43 = por %p41, %p42
      %p44 = scmp.ne.s32.totalorder %s36, %s39
      %p45 = scmp.eq.s32.totalorder %s26, 0
      %p46 = por %p44, %p45
      %p47 = scmp.ne.s32.totalorder %s36, %s39
      %p48 = scmp.eq.s32.totalorder %s31, 1
      %p49 = por %p47, %p48
      %p50 = scmp.ne.s32.totalorder %s39, %s40
      %p51 = scmp.eq.s32.totalorder %s31, 0
      %p52 = por %p50, %p51
      %p53 = scmp.ne.s32.totalorder %s39, %s40
      %p54 = scmp.eq.s32.totalorder %s32, 1
      %p55 = por %p53, %p54
      %p57 = scmp.ne.s32.totalorder %s40, %s56
      %p58 = scmp.eq.s32.totalorder %s32, 0
      %p59 = por %p57, %p58
      %s60 = ssub.s32 %s26, %s33
      %p61 = scmp.eq.s32.totalorder %s60, 0
      %s63 = sadd.s32 %s62, 1
      %s64 = scalar_select %p61, %s62, %s63
      %p67 = pneg %p61
      %p68 = scmp.eq.s32.totalorder %s26, 1
      %p69 = por %p67, %p68
      %p70 = scmp.ne.s32.totalorder %s62, %s65
      %p71 = scmp.eq.s32.totalorder %s26, 0
      %p72 = por %p70, %p71
      %p73 = scmp.ne.s32.totalorder %s62, %s65
      %p74 = scmp.eq.s32.totalorder %s31, 1
      %p75 = por %p73, %p74
      %p76 = scmp.ne.s32.totalorder %s65, %s66
      %p77 = scmp.eq.s32.totalorder %s31, 0
      %p78 = por %p76, %p77
      %p79 = scmp.ne.s32.totalorder %s65, %s66
      %p80 = scmp.eq.s32.totalorder %s32, 1
      %p81 = por %p79, %p80
      %p83 = scmp.ne.s32.totalorder %s66, %s82
      %p84 = scmp.eq.s32.totalorder %s32, 0
      %p85 = por %p83, %p84
      %s86 = ssub.s32 %s26, %s33
      %p87 = scmp.eq.s32.totalorder %s86, 0
      %s89 = sadd.s32 %s88, 1
      %s90 = scalar_select %p87, %s88, %s89
      %p93 = pneg %p87
      %p94 = scmp.eq.s32.totalorder %s26, 1
      %p95 = por %p93, %p94
      %p96 = scmp.ne.s32.totalorder %s88, %s91
      %p97 = scmp.eq.s32.totalorder %s26, 0
      %p98 = por %p96, %p97
      %p99 = scmp.ne.s32.totalorder %s88, %s91
      %p100 = scmp.eq.s32.totalorder %s31, 1
      %p101 = por %p99, %p100
      %p102 = scmp.ne.s32.totalorder %s91, %s92
      %p103 = scmp.eq.s32.totalorder %s31, 0
      %p104 = por %p102, %p103
      %p105 = scmp.ne.s32.totalorder %s91, %s92
      %p106 = scmp.eq.s32.totalorder %s32, 1
      %p107 = por %p105, %p106
      %p109 = scmp.ne.s32.totalorder %s92, %s108
      %p110 = scmp.eq.s32.totalorder %s32, 0
      %p111 = por %p109, %p110
      %s113 = sadd.s32 %s112, 1
      %p116 = scmp.eq.s32.totalorder %s26, 1
      %p117 = scmp.ne.s32.totalorder %s112, %s114
      %p118 = scmp.eq.s32.totalorder %s26, 0
      %p119 = por %p117, %p118
      %p120 = scmp.ne.s32.totalorder %s112, %s114
      %p121 = scmp.eq.s32.totalorder %s31, 1
      %p122 = por %p120, %p121
      %p123 = scmp.ne.s32.totalorder %s114, %s115
      %p124 = scmp.eq.s32.totalorder %s31, 0
      %p125 = por %p123, %p124
      %p126 = scmp.ne.s32.totalorder %s114, %s115
      %p127 = scmp.eq.s32.totalorder %s32, 1
      %p128 = por %p126, %p127
      %p130 = scmp.ne.s32.totalorder %s115, %s129
      %p131 = scmp.eq.s32.totalorder %s32, 0
      %p132 = por %p130, %p131
      %s134 = sadd.s32 %s133, 1
      %p137 = scmp.eq.s32.totalorder %s26, 1
      %p138 = scmp.ne.s32.totalorder %s133, %s135
      %p139 = scmp.eq.s32.totalorder %s26, 0
      %p140 = por %p138, %p139
      %p141 = scmp.ne.s32.totalorder %s133, %s135
      %p142 = scmp.eq.s32.totalorder %s31, 1
      %p143 = por %p141, %p142
      %p144 = scmp.ne.s32.totalorder %s135, %s136
      %p145 = scmp.eq.s32.totalorder %s31, 0
      %p146 = por %p144, %p145
      %p147 = scmp.ne.s32.totalorder %s135, %s136
      %p148 = scmp.eq.s32.totalorder %s32, 1
      %p149 = por %p147, %p148
      %p151 = scmp.ne.s32.totalorder %s136, %s150
      %p152 = scmp.eq.s32.totalorder %s32, 0
      %p153 = por %p151, %p152
      %s155 = sadd.s32 %s154, 1
      %p158 = scmp.eq.s32.totalorder %s26, 1
      %p159 = scmp.ne.s32.totalorder %s154, %s156
      %p160 = scmp.eq.s32.totalorder %s26, 0
      %p161 = por %p159, %p160
      %p162 = scmp.ne.s32.totalorder %s154, %s156
      %p163 = scmp.eq.s32.totalorder %s31, 1
      %p164 = por %p162, %p163
      %p165 = scmp.ne.s32.totalorder %s156, %s157
      %p166 = scmp.eq.s32.totalorder %s31, 0
      %p167 = por %p165, %p166
      %p168 = scmp.ne.s32.totalorder %s156, %s157
      %p169 = scmp.eq.s32.totalorder %s32, 1
      %p170 = por %p168, %p169
      %p172 = scmp.ne.s32.totalorder %s157, %s171
      %p173 = scmp.eq.s32.totalorder %s32, 0
      %p174 = por %p172, %p173
      %s175 = ssub.s32 %s26, %s33
      %p176 = scmp.eq.s32.totalorder %s175, 0
      %s178 = sadd.s32 %s177, 1
      %s179 = scalar_select %p176, %s177, %s178
      %p182 = pneg %p176
      %p183 = scmp.eq.s32.totalorder %s26, 1
      %p184 = por %p182, %p183
      %p185 = scmp.ne.s32.totalorder %s177, %s180
      %p186 = scmp.eq.s32.totalorder %s26, 0
      %p187 = por %p185, %p186
      %p188 = scmp.ne.s32.totalorder %s177, %s180
      %p189 = scmp.eq.s32.totalorder %s31, 1
      %p190 = por %p188, %p189
      %p191 = scmp.ne.s32.totalorder %s180, %s181
      %p192 = scmp.eq.s32.totalorder %s31, 0
      %p193 = por %p191, %p192
      %p194 = scmp.ne.s32.totalorder %s180, %s181
      %p195 = scmp.eq.s32.totalorder %s32, 1
      %p196 = por %p194, %p195
      %p198 = scmp.ne.s32.totalorder %s181, %s197
      %p199 = scmp.eq.s32.totalorder %s32, 0
      %p200 = por %p198, %p199
      %s202 = sadd.s32 %s201, 1
      %p205 = scmp.eq.s32.totalorder %s26, 1
      %p206 = scmp.ne.s32.totalorder %s201, %s203
      %p207 = scmp.eq.s32.totalorder %s26, 0
      %p208 = por %p206, %p207
      %p209 = scmp.ne.s32.totalorder %s201, %s203
      %p210 = scmp.eq.s32.totalorder %s31, 1
      %p211 = por %p209, %p210
      %p212 = scmp.ne.s32.totalorder %s203, %s204
      %p213 = scmp.eq.s32.totalorder %s31, 0
      %p214 = por %p212, %p213
      %p215 = scmp.ne.s32.totalorder %s203, %s204
      %p216 = scmp.eq.s32.totalorder %s32, 1
      %p217 = por %p215, %p216
      %p219 = scmp.ne.s32.totalorder %s204, %s218
      %p220 = scmp.eq.s32.totalorder %s32, 0
      %p221 = por %p219, %p220
      %s223 = sadd.s32 %s222, 1
      %p226 = scmp.eq.s32.totalorder %s26, 1
      %p227 = scmp.ne.s32.totalorder %s222, %s224
      %p228 = scmp.eq.s32.totalorder %s26, 0
      %p229 = por %p227, %p228
      %p230 = scmp.ne.s32.totalorder %s222, %s224
      %p231 = scmp.eq.s32.totalorder %s31, 1
      %p232 = por %p230, %p231
      %p233 = scmp.ne.s32.totalorder %s224, %s225
      %p234 = scmp.eq.s32.totalorder %s31, 0
      %p235 = por %p233, %p234
      %p236 = scmp.ne.s32.totalorder %s224, %s225
      %p237 = scmp.eq.s32.totalorder %s32, 1
      %p238 = por %p236, %p237
      %p240 = scmp.ne.s32.totalorder %s225, %s239
      %p241 = scmp.eq.s32.totalorder %s32, 0
      %p242 = por %p240, %p241
      %s243 = ssub.s32 %s26, %s33
      %p244 = scmp.eq.s32.totalorder %s243, 0
      %s246 = sadd.s32 %s245, 1
      %s247 = scalar_select %p244, %s245, %s246
      %p250 = pneg %p244
      %p251 = scmp.eq.s32.totalorder %s26, 1
      %p252 = por %p250, %p251
      %p253 = scmp.ne.s32.totalorder %s245, %s248
      %p254 = scmp.eq.s32.totalorder %s26, 0
      %p255 = por %p253, %p254
      %p256 = scmp.ne.s32.totalorder %s245, %s248
      %p257 = scmp.eq.s32.totalorder %s31, 1
      %p258 = por %p256, %p257
      %p259 = scmp.ne.s32.totalorder %s248, %s249
      %p260 = scmp.eq.s32.totalorder %s31, 0
      %p261 = por %p259, %p260
      %p262 = scmp.ne.s32.totalorder %s248, %s249
      %p263 = scmp.eq.s32.totalorder %s32, 1
      %p264 = por %p262, %p263
      %p266 = scmp.ne.s32.totalorder %s249, %s265
      %p267 = scmp.eq.s32.totalorder %s32, 0
      %p268 = por %p266, %p267
      %p269 = scmp.le.s32.totalorder 1, %s26
      %p270 = scmp.lt.s32.totalorder %s26, 3
      %p271 = pnand %p269, %p270
      %p272 = pneg %p271
      // Predicated region
      $region9: #{tpu_custom_call.1} parent=5 // pred_check
        _
      $region10: #{tpu_custom_call.1} parent=5 // pred_check_branch
        %274 = sbr.rel (%p271) target = $region12
      $region11: #{tpu_custom_call.1} parent=5 // pred_region
        %s275 = ssub.s32 %s26, 1
        // Predicated region
        $region13: #{tpu_custom_call.1} parent=11 // pred_check
          %p276 = pneg %p125
        $region14: #{tpu_custom_call.1} parent=11 // pred_check_branch
          %278 = sbr.rel (%p276) target = $region16
        $region15: #{tpu_custom_call.1} parent=11 // pred_region
          _
        $region16: #{tpu_custom_call.1} parent=11 // pred_fallthru
          _
        // Predicated region
        $region17: #{tpu_custom_call.1} parent=11 // pred_check
          %p279 = pneg %p146
        $region18: #{tpu_custom_call.1} parent=11 // pred_check_branch
          %281 = sbr.rel (%p279) target = $region20
        $region19: #{tpu_custom_call.1} parent=11 // pred_region
          %s283 = ssub.s32 64, 64
          %284 = vsyncadd [#allocation9], %s283
          %s286 = sshll.u32 [#allocation8], 4
          %s287 = int_to_ptr.vmem [resolvable:$true] %s286
          %289 = dma.hbm_to_vmem [thread:$0]  %s4, 64, %s287, [#allocation9]
        $region20: #{tpu_custom_call.1} parent=11 // pred_fallthru
          _
        // Predicated region
        $region21: #{tpu_custom_call.1} parent=11 // pred_check
          %p290 = pneg %p167
        $region22: #{tpu_custom_call.1} parent=11 // pred_check_branch
          %292 = sbr.rel (%p290) target = $region24
        $region23: #{tpu_custom_call.1} parent=11 // pred_region
          %s294 = ssub.s32 64, 64
          %295 = vsyncadd [#allocation9], %s294
          %s297 = sshll.u32 [#allocation10], 4
          %s298 = int_to_ptr.vmem [resolvable:$true] %s297
          %300 = dma.hbm_to_vmem [thread:$0]  %s5, 64, %s298, [#allocation9]
        $region24: #{tpu_custom_call.1} parent=11 // pred_fallthru
          _
        // Predicated region
        $region25: #{tpu_custom_call.1} parent=11 // pred_check
          %p301 = pneg %p214
        $region26: #{tpu_custom_call.1} parent=11 // pred_check_branch
          %303 = sbr.rel (%p301) target = $region28
        $region27: #{tpu_custom_call.1} parent=11 // pred_region
          %s305 = ssub.s32 256, 256
          %306 = vsyncadd [#allocation12], %s305
          %s307 = sshll.u32 [#allocation11], 4
          %s308 = int_to_ptr.vmem [resolvable:$true] %s307
          %313 = dma.hbm_to_vmem [thread:$0]  %s7, 256, %s308, [#allocation12], 64, 64, 4
        $region28: #{tpu_custom_call.1} parent=11 // pred_fallthru
          _
        // Predicated region
        $region29: #{tpu_custom_call.1} parent=11 // pred_check
          %p314 = pneg %p235
        $region30: #{tpu_custom_call.1} parent=11 // pred_check_branch
          %316 = sbr.rel (%p314) target = $region32
        $region31: #{tpu_custom_call.1} parent=11 // pred_region
          _
        $region32: #{tpu_custom_call.1} parent=11 // pred_fallthru
          _
      $region12: #{tpu_custom_call.1} parent=5 // pred_fallthru
        _
      %p317 = scmp.lt.s32.totalorder %s26, 2
      // Predicated region
      $region33: #{tpu_custom_call.1} parent=5 // pred_check
        %p318 = pneg %p317
      $region34: #{tpu_custom_call.1} parent=5 // pred_check_branch
        %320 = sbr.rel (%p318) target = $region36
      $region35: #{tpu_custom_call.1} parent=5 // pred_region
        // Predicated region
        $region37: #{tpu_custom_call.1} parent=35 // pred_check
          %p321 = pneg %p46
        $region38: #{tpu_custom_call.1} parent=35 // pred_check_branch
          %323 = sbr.rel (%p321) target = $region40
        $region39: #{tpu_custom_call.1} parent=35 // pred_region
          %s324 = sand.u32 %s36, 1
          %s325 = scalar_lea.sflag [#allocation3], %s324
          %s326 = sand.u32 %s36, 1
          %s327 = smul.addr %s326, 32
          %s328 = scalar_lea.vmem [#allocation2], %s327
          %s330 = ssub.s32 512, 512
          %331 = vsyncadd %s325, %s330
          %s332 = smul.addr %s26, 4
          %s333 = smul.addr %s332, 128
          %s334 = scalar_lea.hbm %s0, %s333
          %s335 = sshll.u32 %s328, 4
          %s336 = int_to_ptr.vmem [resolvable:$true] %s335
          %341 = dma.hbm_to_vmem [thread:$0]  %s334, 512, %s336, %s325, 128, 128, 8
        $region40: #{tpu_custom_call.1} parent=35 // pred_fallthru
          _
        // Predicated region
        $region41: #{tpu_custom_call.1} parent=35 // pred_check
          %p342 = pneg %p72
        $region42: #{tpu_custom_call.1} parent=35 // pred_check_branch
          %344 = sbr.rel (%p342) target = $region44
        $region43: #{tpu_custom_call.1} parent=35 // pred_region
          %s345 = sand.u32 %s26, 1
          %s346 = scalar_lea.sflag [#allocation6], %s345
          %s347 = sand.u32 %s62, 1
          %s348 = smul.addr %s347, 32
          %s349 = scalar_lea.vmem [#allocation5], %s348
          %s351 = ssub.s32 512, 512
          %352 = vsyncadd %s346, %s351
          %s353 = smul.addr %s26, 4
          %s354 = smul.addr %s353, 128
          %s355 = scalar_lea.hbm %s1, %s354
          %s356 = sshll.u32 %s349, 4
          %s357 = int_to_ptr.vmem [resolvable:$true] %s356
          %362 = dma.hbm_to_vmem [thread:$0]  %s355, 512, %s357, %s346, 128, 128, 8
        $region44: #{tpu_custom_call.1} parent=35 // pred_fallthru
          _
        // Predicated region
        $region45: #{tpu_custom_call.1} parent=35 // pred_check
          %p363 = pneg %p98
        $region46: #{tpu_custom_call.1} parent=35 // pred_check_branch
          %365 = sbr.rel (%p363) target = $region48
        $region47: #{tpu_custom_call.1} parent=35 // pred_region
          %s366 = sand.u32 %s26, 1
          %s367 = scalar_lea.sflag [#allocation6], %s366
          %s368 = sand.u32 %s88, 1
          %s369 = smul.addr %s368, 32
          %s370 = scalar_lea.vmem [#allocation7], %s369
          %s372 = ssub.s32 512, 512
          %373 = vsyncadd %s367, %s372
          %s374 = smul.addr %s26, 4
          %s375 = smul.addr %s374, 128
          %s376 = scalar_lea.hbm %s2, %s375
          %s377 = sshll.u32 %s370, 4
          %s378 = int_to_ptr.vmem [resolvable:$true] %s377
          %383 = dma.hbm_to_vmem [thread:$0]  %s376, 512, %s378, %s367, 128, 128, 8
        $region48: #{tpu_custom_call.1} parent=35 // pred_fallthru
          _
        // Predicated region
        $region49: #{tpu_custom_call.1} parent=35 // pred_check
          %p384 = pneg %p187
        $region50: #{tpu_custom_call.1} parent=35 // pred_check_branch
          %386 = sbr.rel (%p384) target = $region52
        $region51: #{tpu_custom_call.1} parent=35 // pred_region
          %p387 = scmp.lt.s32.totalorder %s26, 1
          %s388 = scalar_select %p387, %s26, 1
          %s389 = smul.addr %s388, 8
          %s390 = scalar_lea.vmem %s6, %s389
        $region52: #{tpu_custom_call.1} parent=35 // pred_fallthru
          _
      $region36: #{tpu_custom_call.1} parent=5 // pred_fallthru
        _
      %p391 = scmp.le.s32.totalorder 1, %s26
      %p392 = scmp.lt.s32.totalorder %s26, 3
      %p393 = pnand %p391, %p392
      %p394 = pneg %p393
      // Predicated region
      $region53: #{tpu_custom_call.1} parent=5 // pred_check
        _
      $region54: #{tpu_custom_call.1} parent=5 // pred_check_branch
        %396 = sbr.rel (%p393) target = $region56
      $region55: #{tpu_custom_call.1} parent=5 // pred_region
        %s397 = ssub.s32 %s26, 1
        %s398 = sand.u32 %s39, 1
        %s399 = scalar_lea.sflag [#allocation3], %s398
        %s400 = sand.u32 %s39, 1
        %s401 = smul.addr %s400, 32
        %s402 = scalar_lea.vmem [#allocation2], %s401
        // Predicated region
        $region57: #{tpu_custom_call.1} parent=55 // pred_check
          %p403 = pneg %p52
        $region58: #{tpu_custom_call.1} parent=55 // pred_check_branch
          %405 = sbr.rel (%p403) target = $region60
        $region59: #{tpu_custom_call.1} parent=55 // pred_region
          %406 = dma.done %s399, 512
        $region60: #{tpu_custom_call.1} parent=55 // pred_fallthru
          _
        %s407 = sand.u32 %s31, 1
        %s408 = scalar_lea.sflag [#allocation6], %s407
        %s409 = sand.u32 %s65, 1
        %s410 = smul.addr %s409, 32
        %s411 = scalar_lea.vmem [#allocation5], %s410
        // Predicated region
        $region61: #{tpu_custom_call.1} parent=55 // pred_check
          %p412 = pneg %p78
        $region62: #{tpu_custom_call.1} parent=55 // pred_check_branch
          %414 = sbr.rel (%p412) target = $region64
        $region63: #{tpu_custom_call.1} parent=55 // pred_region
          %415 = dma.done %s408, 512
        $region64: #{tpu_custom_call.1} parent=55 // pred_fallthru
          _
        %s416 = sand.u32 %s31, 1
        %s417 = scalar_lea.sflag [#allocation6], %s416
        %s418 = sand.u32 %s91, 1
        %s419 = smul.addr %s418, 32
        %s420 = scalar_lea.vmem [#allocation7], %s419
        // Predicated region
        $region65: #{tpu_custom_call.1} parent=55 // pred_check
          %p421 = pneg %p104
        $region66: #{tpu_custom_call.1} parent=55 // pred_check_branch
          %423 = sbr.rel (%p421) target = $region68
        $region67: #{tpu_custom_call.1} parent=55 // pred_region
          %424 = dma.done %s417, 512
        $region68: #{tpu_custom_call.1} parent=55 // pred_fallthru
          _
        // Predicated region
        $region69: #{tpu_custom_call.1} parent=55 // pred_check
          %p425 = pneg %p146
        $region70: #{tpu_custom_call.1} parent=55 // pred_check_branch
          %427 = sbr.rel (%p425) target = $region72
        $region71: #{tpu_custom_call.1} parent=55 // pred_region
          %428 = dma.done [#allocation9], 64
        $region72: #{tpu_custom_call.1} parent=55 // pred_fallthru
          _
        // Predicated region
        $region73: #{tpu_custom_call.1} parent=55 // pred_check
          %p429 = pneg %p167
        $region74: #{tpu_custom_call.1} parent=55 // pred_check_branch
          %431 = sbr.rel (%p429) target = $region76
        $region75: #{tpu_custom_call.1} parent=55 // pred_region
          %432 = dma.done [#allocation9], 64
        $region76: #{tpu_custom_call.1} parent=55 // pred_fallthru
          _
        // Predicated region
        $region77: #{tpu_custom_call.1} parent=55 // pred_check
          %p433 = pneg %p214
        $region78: #{tpu_custom_call.1} parent=55 // pred_check_branch
          %435 = sbr.rel (%p433) target = $region80
        $region79: #{tpu_custom_call.1} parent=55 // pred_region
          %436 = dma.done [#allocation12], 256
        $region80: #{tpu_custom_call.1} parent=55 // pred_fallthru
          _
        %s437 = sand.u32 %s39, 1
        %s438 = scalar_lea.sflag [#allocation3], %s437
        %s439 = sand.u32 %s39, 1
        %s440 = smul.addr %s439, 32
        %s441 = scalar_lea.vmem [#allocation2], %s440
        %p442 = pneg %p52
        %p443 = pneg %p49
        %s444 = sand.u32 %s31, 1
        %s445 = scalar_lea.sflag [#allocation6], %s444
        %s446 = sand.u32 %s65, 1
        %s447 = smul.addr %s446, 32
        %s448 = scalar_lea.vmem [#allocation5], %s447
        %p449 = pneg %p78
        %p450 = pneg %p75
        %s451 = sand.u32 %s31, 1
        %s452 = scalar_lea.sflag [#allocation6], %s451
        %s453 = sand.u32 %s91, 1
        %s454 = smul.addr %s453, 32
        %s455 = scalar_lea.vmem [#allocation7], %s454
        %p456 = pneg %p104
        %p457 = pneg %p101
        %p458 = pneg %p125
        %p459 = pneg %p122
        %p460 = pneg %p146
        %p461 = pneg %p143
        %p462 = pneg %p167
        %p463 = pneg %p164
        %p464 = scmp.lt.s32.totalorder %s31, 1
        %s465 = scalar_select %p464, %s31, 1
        %s466 = smul.addr %s465, 8
        %s467 = scalar_lea.vmem %s6, %s466
        %p468 = pneg %p193
        %p469 = pneg %p190
        %p470 = pneg %p214
        %p471 = pneg %p211
        %p472 = pneg %p235
        %p473 = pneg %p232
        %p474 = pneg %p261
        %p475 = pneg %p258
        %s476 = sand.u32 %s248, 1
        %s477 = scalar_lea.sflag [#allocation4], %s476
        %s478 = sand.u32 %s248, 1
        %s479 = smul.addr %s478, 8
        %s480 = scalar_lea.vmem [#allocation13], %s479
        %p481 = scmp.lt.s32.totalorder %s31, 1
        %s482 = scalar_select %p481, %s31, 1
        %s483 = smul.addr %s482, 8
        %s484 = scalar_lea.vmem %s6, %s483
        %v486 = vld [vmem:[%s402] sm:$0xff]
        %v487 = vld [vmem:[%s402 + $0x8] sm:$0xff]
        %v488 = vld [vmem:[%s402 + $0x10] sm:$0xff]
        %v489 = vld [vmem:[%s402 + $0x18] sm:$0xff]
        %v490 = vpack.c.bf16 %v487, %v486
        %v491 = vpack.c.bf16 %v489, %v488
        %v492 = vld [vmem:[%s3] sm:$0xf]
        %vm493 = vcmask 64512
        %v495 = vsel %vm493, %v490, 0
        %v498 = vsel %vm493, %v491, 0
        %vm500 = vcmask 1043456
        %v502 = vsel %vm500, %v492, 0
        %504 = vmatprep.subr.bf16.mxu0 0
        %505 = vmatpush1.bf16.msra.mxu0 %v502
        %506 = vmatprep.subr.bf16.mxu0 0
        %507 = vmatpush1.bf16.msra.mxu0 0
        %508 = vmatprep.subr.bf16.mxu0 0
        %509 = vmatpush1.bf16.msra.mxu0 0
        %510 = vmatprep.subr.bf16.mxu0 0
        %511 = vmatpush1.bf16.msra.mxu0 0
        %512 = vmatprep.subr.bf16.mxu0 0
        %513 = vmatpush1.bf16.msra.mxu0 0
        %514 = vmatprep.subr.bf16.mxu0 0
        %515 = vmatpush1.bf16.msra.mxu0 0
        %516 = vmatprep.subr.bf16.mxu0 0
        %517 = vmatpush1.bf16.msra.mxu0 0
        %518 = vmatprep.subr.bf16.mxu0 0
        %519 = vmatpush1.bf16.msra.mxu0 0
        %520 = vmatprep.subr.bf16.mxu0 0
        %521 = vmatpush1.bf16.msra.mxu0 0
        %522 = vmatprep.subr.bf16.mxu0 0
        %523 = vmatpush1.bf16.msra.mxu0 0
        %524 = vmatprep.subr.bf16.mxu0 0
        %525 = vmatpush1.bf16.msra.mxu0 0
        %526 = vmatprep.subr.bf16.mxu0 0
        %527 = vmatpush1.bf16.msra.mxu0 0
        %528 = vmatprep.subr.bf16.mxu0 0
        %529 = vmatpush1.bf16.msra.mxu0 0
        %530 = vmatprep.subr.bf16.mxu0 0
        %531 = vmatpush1.bf16.msra.mxu0 0
        %532 = vmatprep.subr.bf16.mxu0 0
        %533 = vmatpush1.bf16.msra.mxu0 0
        %534 = vmatprep.subr.bf16.mxu0 0
        %535 = vmatpush1.bf16.msra.mxu0 0
        %536 = vmatprep.mubr.bf16.mxu0 0
        %537 = vmatmul.mubr.bf16.gmra.mrb[0].mxu0 %v495
        %v538 = vpop.f32.mrb[0].mxu0
        %v539 = vadd.f32 0.0, %v538
        %v540 = vpop.f32.mrb[0].mxu0
        %v541 = vpop.f32.mrb[0].mxu0
        %v542 = vadd.f32 0.0, %v541
        %v543 = vpop.f32.mrb[0].mxu0
        %544 = vmatprep.mubr.bf16.mxu0 0
        %545 = vmatmul.mubr.bf16.gmra.mrb[0].mxu0 %v498
        %v546 = vpop.f32.mrb[0].mxu0
        %v547 = vadd.f32 0.0, %v546
        %v548 = vpop.f32.mrb[0].mxu0
        %v549 = vpop.f32.mrb[0].mxu0
        %v550 = vadd.f32 0.0, %v549
        %v551 = vpop.f32.mrb[0].mxu0
        %552 = vdwg.mxu0
        %v553 = vld [vmem:[%s411] sm:$0xff]
        %v554 = vld [vmem:[%s411 + $0x8] sm:$0xff]
        %v555 = vld [vmem:[%s411 + $0x10] sm:$0xff]
        %v556 = vld [vmem:[%s411 + $0x18] sm:$0xff]
        %v557 = vpack.c.bf16 %v554, %v553
        %v558 = vpack.c.bf16 %v556, %v555
        %v559 = vld [vmem:[#allocation8] sm:$0xf]
        %v561 = vsel %vm493, %v557, 0
        %v564 = vsel %vm493, %v558, 0
        %v567 = vsel %vm500, %v559, 0
        %569 = vmatprep.subr.bf16.mxu0 0
        %570 = vmatpush1.bf16.msra.mxu0 %v567
        %571 = vmatprep.subr.bf16.mxu0 0
        %572 = vmatpush1.bf16.msra.mxu0 0
        %573 = vmatprep.subr.bf16.mxu0 0
        %574 = vmatpush1.bf16.msra.mxu0 0
        %575 = vmatprep.subr.bf16.mxu0 0
        %576 = vmatpush1.bf16.msra.mxu0 0
        %577 = vmatprep.subr.bf16.mxu0 0
        %578 = vmatpush1.bf16.msra.mxu0 0
        %579 = vmatprep.subr.bf16.mxu0 0
        %580 = vmatpush1.bf16.msra.mxu0 0
        %581 = vmatprep.subr.bf16.mxu0 0
        %582 = vmatpush1.bf16.msra.mxu0 0
        %583 = vmatprep.subr.bf16.mxu0 0
        %584 = vmatpush1.bf16.msra.mxu0 0
        %585 = vmatprep.subr.bf16.mxu0 0
        %586 = vmatpush1.bf16.msra.mxu0 0
        %587 = vmatprep.subr.bf16.mxu0 0
        %588 = vmatpush1.bf16.msra.mxu0 0
        %589 = vmatprep.subr.bf16.mxu0 0
        %590 = vmatpush1.bf16.msra.mxu0 0
        %591 = vmatprep.subr.bf16.mxu0 0
        %592 = vmatpush1.bf16.msra.mxu0 0
        %593 = vmatprep.subr.bf16.mxu0 0
        %594 = vmatpush1.bf16.msra.mxu0 0
        %595 = vmatprep.subr.bf16.mxu0 0
        %596 = vmatpush1.bf16.msra.mxu0 0
        %597 = vmatprep.subr.bf16.mxu0 0
        %598 = vmatpush1.bf16.msra.mxu0 0
        %599 = vmatprep.subr.bf16.mxu0 0
        %600 = vmatpush1.bf16.msra.mxu0 0
        %601 = vmatprep.mubr.bf16.mxu0 0
        %602 = vmatmul.mubr.bf16.gmra.mrb[0].mxu0 %v561
        %v603 = vpop.f32.mrb[0].mxu0
        %v604 = vadd.f32 0.0, %v603
        %v605 = vpop.f32.mrb[0].mxu0
        %v606 = vpop.f32.mrb[0].mxu0
        %v607 = vadd.f32 0.0, %v606
        %v608 = vpop.f32.mrb[0].mxu0
        %609 = vmatprep.mubr.bf16.mxu0 0
        %610 = vmatmul.mubr.bf16.gmra.mrb[0].mxu0 %v564
        %v611 = vpop.f32.mrb[0].mxu0
        %v612 = vadd.f32 0.0, %v611
        %v613 = vpop.f32.mrb[0].mxu0
        %v614 = vpop.f32.mrb[0].mxu0
        %v615 = vadd.f32 0.0, %v614
        %v616 = vpop.f32.mrb[0].mxu0
        %617 = vdwg.mxu0
        %v618 = vld [vmem:[%s420] sm:$0xff]
        %v619 = vld [vmem:[%s420 + $0x8] sm:$0xff]
        %v620 = vld [vmem:[%s420 + $0x10] sm:$0xff]
        %v621 = vld [vmem:[%s420 + $0x18] sm:$0xff]
        %v622 = vpack.c.bf16 %v619, %v618
        %v623 = vpack.c.bf16 %v621, %v620
        %v624 = vld [vmem:[#allocation10] sm:$0xf]
        %v626 = vsel %vm493, %v622, 0
        %v629 = vsel %vm493, %v623, 0
        %v632 = vsel %vm500, %v624, 0
        %634 = vmatprep.subr.bf16.mxu0 0
        %635 = vmatpush1.bf16.msra.mxu0 %v632
        %636 = vmatprep.subr.bf16.mxu0 0
        %637 = vmatpush1.bf16.msra.mxu0 0
        %638 = vmatprep.subr.bf16.mxu0 0
        %639 = vmatpush1.bf16.msra.mxu0 0
        %640 = vmatprep.subr.bf16.mxu0 0
        %641 = vmatpush1.bf16.msra.mxu0 0
        %642 = vmatprep.subr.bf16.mxu0 0
        %643 = vmatpush1.bf16.msra.mxu0 0
        %644 = vmatprep.subr.bf16.mxu0 0
        %645 = vmatpush1.bf16.msra.mxu0 0
        %646 = vmatprep.subr.bf16.mxu0 0
        %647 = vmatpush1.bf16.msra.mxu0 0
        %648 = vmatprep.subr.bf16.mxu0 0
        %649 = vmatpush1.bf16.msra.mxu0 0
        %650 = vmatprep.subr.bf16.mxu0 0
        %651 = vmatpush1.bf16.msra.mxu0 0
        %652 = vmatprep.subr.bf16.mxu0 0
        %653 = vmatpush1.bf16.msra.mxu0 0
        %654 = vmatprep.subr.bf16.mxu0 0
        %655 = vmatpush1.bf16.msra.mxu0 0
        %656 = vmatprep.subr.bf16.mxu0 0
        %657 = vmatpush1.bf16.msra.mxu0 0
        %658 = vmatprep.subr.bf16.mxu0 0
        %659 = vmatpush1.bf16.msra.mxu0 0
        %660 = vmatprep.subr.bf16.mxu0 0
        %661 = vmatpush1.bf16.msra.mxu0 0
        %662 = vmatprep.subr.bf16.mxu0 0
        %663 = vmatpush1.bf16.msra.mxu0 0
        %664 = vmatprep.subr.bf16.mxu0 0
        %665 = vmatpush1.bf16.msra.mxu0 0
        %666 = vmatprep.mubr.bf16.mxu0 0
        %667 = vmatmul.mubr.bf16.gmra.mrb[0].mxu0 %v626
        %v668 = vpop.f32.mrb[0].mxu0
        %v669 = vadd.f32 0.0, %v668
        %v670 = vpop.f32.mrb[0].mxu0
        %v671 = vpop.f32.mrb[0].mxu0
        %v672 = vadd.f32 0.0, %v671
        %v673 = vpop.f32.mrb[0].mxu0
        %674 = vmatprep.mubr.bf16.mxu0 0
        %675 = vmatmul.mubr.bf16.gmra.mrb[0].mxu0 %v629
        %v676 = vpop.f32.mrb[0].mxu0
        %v677 = vadd.f32 0.0, %v676
        %v678 = vpop.f32.mrb[0].mxu0
        %v679 = vpop.f32.mrb[0].mxu0
        %v680 = vadd.f32 0.0, %v679
        %v681 = vpop.f32.mrb[0].mxu0
        %682 = vdwg.mxu0
        %v683 = vpack.c.bf16 %v539, %v539
        %v684 = vpack.c.bf16 %v542, %v542
        %v685 = vpack.c.bf16 %v547, %v547
        %v686 = vpack.c.bf16 %v550, %v550
        %v687 = vpack.c.bf16 %v604, %v604
        %v688 = vpack.c.bf16 %v607, %v607
        %v689 = vpack.c.bf16 %v612, %v612
        %v690 = vpack.c.bf16 %v615, %v615
        %v691 = vpack.c.bf16 %v669, %v669
        %v692 = vpack.c.bf16 %v672, %v672
        %v693 = vpack.c.bf16 %v677, %v677
        %v694 = vpack.c.bf16 %v680, %v680
        %v696 = vsel %vm493, %v683, 0
        %v699 = vsel %vm493, %v687, 0
        %701 = vmatprep.subr.bf16.mxu0 0
        %702 = vmatpush1.bf16.xpose.msra.mxu0 %v699
        %703 = vmatprep.subr.bf16.mxu0 0
        %704 = vmatpush1.bf16.xpose.msra.mxu0 0
        %705 = vmatprep.subr.bf16.mxu0 0
        %706 = vmatpush1.bf16.xpose.msra.mxu0 0
        %707 = vmatprep.subr.bf16.mxu0 0
        %708 = vmatpush1.bf16.xpose.msra.mxu0 0
        %709 = vmatprep.subr.bf16.mxu0 0
        %710 = vmatpush1.bf16.xpose.msra.mxu0 0
        %711 = vmatprep.subr.bf16.mxu0 0
        %712 = vmatpush1.bf16.xpose.msra.mxu0 0
        %713 = vmatprep.subr.bf16.mxu0 0
        %714 = vmatpush1.bf16.xpose.msra.mxu0 0
        %715 = vmatprep.subr.bf16.mxu0 0
        %716 = vmatpush1.bf16.xpose.msra.mxu0 0
        %717 = vmatprep.subr.bf16.mxu0 0
        %718 = vmatpush1.bf16.xpose.msra.mxu0 0
        %719 = vmatprep.subr.bf16.mxu0 0
        %720 = vmatpush1.bf16.xpose.msra.mxu0 0
        %721 = vmatprep.subr.bf16.mxu0 0
        %722 = vmatpush1.bf16.xpose.msra.mxu0 0
        %723 = vmatprep.subr.bf16.mxu0 0
        %724 = vmatpush1.bf16.xpose.msra.mxu0 0
        %725 = vmatprep.subr.bf16.mxu0 0
        %726 = vmatpush1.bf16.xpose.msra.mxu0 0
        %727 = vmatprep.subr.bf16.mxu0 0
        %728 = vmatpush1.bf16.xpose.msra.mxu0 0
        %729 = vmatprep.subr.bf16.mxu0 0
        %730 = vmatpush1.bf16.xpose.msra.mxu0 0
        %731 = vmatprep.subr.bf16.mxu0 0
        %732 = vmatpush1.bf16.xpose.msra.mxu0 0
        %733 = vmatprep.mubr.bf16.mxu0 0
        %734 = vmatmul.mubr.bf16.gmra.mrb[0].mxu0 %v696
        %v735 = vpop.f32.mrb[0].mxu0
        %v736 = vadd.f32 0.0, %v735
        %v737 = vpop.f32.mrb[0].mxu0
        %v738 = vpop.f32.mrb[0].mxu0
        %v739 = vpop.f32.mrb[0].mxu0
        %740 = vdwg.mxu0
        %v742 = vsel %vm493, %v684, 0
        %v745 = vsel %vm493, %v688, 0
        %747 = vmatprep.subr.bf16.mxu0 0
        %748 = vmatpush1.bf16.xpose.msra.mxu0 %v745
        %749 = vmatprep.subr.bf16.mxu0 0
        %750 = vmatpush1.bf16.xpose.msra.mxu0 0
        %751 = vmatprep.subr.bf16.mxu0 0
        %752 = vmatpush1.bf16.xpose.msra.mxu0 0
        %753 = vmatprep.subr.bf16.mxu0 0
        %754 = vmatpush1.bf16.xpose.msra.mxu0 0
        %755 = vmatprep.subr.bf16.mxu0 0
        %756 = vmatpush1.bf16.xpose.msra.mxu0 0
        %757 = vmatprep.subr.bf16.mxu0 0
        %758 = vmatpush1.bf16.xpose.msra.mxu0 0
        %759 = vmatprep.subr.bf16.mxu0 0
        %760 = vmatpush1.bf16.xpose.msra.mxu0 0
        %761 = vmatprep.subr.bf16.mxu0 0
        %762 = vmatpush1.bf16.xpose.msra.mxu0 0
        %763 = vmatprep.subr.bf16.mxu0 0
        %764 = vmatpush1.bf16.xpose.msra.mxu0 0
        %765 = vmatprep.subr.bf16.mxu0 0
        %766 = vmatpush1.bf16.xpose.msra.mxu0 0
        %767 = vmatprep.subr.bf16.mxu0 0
        %768 = vmatpush1.bf16.xpose.msra.mxu0 0
        %769 = vmatprep.subr.bf16.mxu0 0
        %770 = vmatpush1.bf16.xpose.msra.mxu0 0
        %771 = vmatprep.subr.bf16.mxu0 0
        %772 = vmatpush1.bf16.xpose.msra.mxu0 0
        %773 = vmatprep.subr.bf16.mxu0 0
        %774 = vmatpush1.bf16.xpose.msra.mxu0 0
        %775 = vmatprep.subr.bf16.mxu0 0
        %776 = vmatpush1.bf16.xpose.msra.mxu0 0
        %777 = vmatprep.subr.bf16.mxu0 0
        %778 = vmatpush1.bf16.xpose.msra.mxu0 0
        %779 = vmatprep.mubr.bf16.mxu0 0
        %780 = vmatmul.mubr.bf16.gmra.mrb[0].mxu0 %v742
        %v781 = vpop.f32.mrb[0].mxu0
        %v782 = vadd.f32 0.0, %v781
        %v783 = vpop.f32.mrb[0].mxu0
        %v784 = vpop.f32.mrb[0].mxu0
        %v785 = vpop.f32.mrb[0].mxu0
        %786 = vdwg.mxu0
        %v788 = vsel %vm493, %v685, 0
        %v791 = vsel %vm493, %v689, 0
        %793 = vmatprep.subr.bf16.mxu0 0
        %794 = vmatpush1.bf16.xpose.msra.mxu0 %v791
        %795 = vmatprep.subr.bf16.mxu0 0
        %796 = vmatpush1.bf16.xpose.msra.mxu0 0
        %797 = vmatprep.subr.bf16.mxu0 0
        %798 = vmatpush1.bf16.xpose.msra.mxu0 0
        %799 = vmatprep.subr.bf16.mxu0 0
        %800 = vmatpush1.bf16.xpose.msra.mxu0 0
        %801 = vmatprep.subr.bf16.mxu0 0
        %802 = vmatpush1.bf16.xpose.msra.mxu0 0
        %803 = vmatprep.subr.bf16.mxu0 0
        %804 = vmatpush1.bf16.xpose.msra.mxu0 0
        %805 = vmatprep.subr.bf16.mxu0 0
        %806 = vmatpush1.bf16.xpose.msra.mxu0 0
        %807 = vmatprep.subr.bf16.mxu0 0
        %808 = vmatpush1.bf16.xpose.msra.mxu0 0
        %809 = vmatprep.subr.bf16.mxu0 0
        %810 = vmatpush1.bf16.xpose.msra.mxu0 0
        %811 = vmatprep.subr.bf16.mxu0 0
        %812 = vmatpush1.bf16.xpose.msra.mxu0 0
        %813 = vmatprep.subr.bf16.mxu0 0
        %814 = vmatpush1.bf16.xpose.msra.mxu0 0
        %815 = vmatprep.subr.bf16.mxu0 0
        %816 = vmatpush1.bf16.xpose.msra.mxu0 0
        %817 = vmatprep.subr.bf16.mxu0 0
        %818 = vmatpush1.bf16.xpose.msra.mxu0 0
        %819 = vmatprep.subr.bf16.mxu0 0
        %820 = vmatpush1.bf16.xpose.msra.mxu0 0
        %821 = vmatprep.subr.bf16.mxu0 0
        %822 = vmatpush1.bf16.xpose.msra.mxu0 0
        %823 = vmatprep.subr.bf16.mxu0 0
        %824 = vmatpush1.bf16.xpose.msra.mxu0 0
        %825 = vmatprep.mubr.bf16.mxu0 0
        %826 = vmatmul.mubr.bf16.gmra.mrb[0].mxu0 %v788
        %v827 = vpop.f32.mrb[0].mxu0
        %v828 = vadd.f32 0.0, %v827
        %v829 = vpop.f32.mrb[0].mxu0
        %v830 = vpop.f32.mrb[0].mxu0
        %v831 = vpop.f32.mrb[0].mxu0
        %832 = vdwg.mxu0
        %v834 = vsel %vm493, %v686, 0
        %v837 = vsel %vm493, %v690, 0
        %839 = vmatprep.subr.bf16.mxu0 0
        %840 = vmatpush1.bf16.xpose.msra.mxu0 %v837
        %841 = vmatprep.subr.bf16.mxu0 0
        %842 = vmatpush1.bf16.xpose.msra.mxu0 0
        %843 = vmatprep.subr.bf16.mxu0 0
        %844 = vmatpush1.bf16.xpose.msra.mxu0 0
        %845 = vmatprep.subr.bf16.mxu0 0
        %846 = vmatpush1.bf16.xpose.msra.mxu0 0
        %847 = vmatprep.subr.bf16.mxu0 0
        %848 = vmatpush1.bf16.xpose.msra.mxu0 0
        %849 = vmatprep.subr.bf16.mxu0 0
        %850 = vmatpush1.bf16.xpose.msra.mxu0 0
        %851 = vmatprep.subr.bf16.mxu0 0
        %852 = vmatpush1.bf16.xpose.msra.mxu0 0
        %853 = vmatprep.subr.bf16.mxu0 0
        %854 = vmatpush1.bf16.xpose.msra.mxu0 0
        %855 = vmatprep.subr.bf16.mxu0 0
        %856 = vmatpush1.bf16.xpose.msra.mxu0 0
        %857 = vmatprep.subr.bf16.mxu0 0
        %858 = vmatpush1.bf16.xpose.msra.mxu0 0
        %859 = vmatprep.subr.bf16.mxu0 0
        %860 = vmatpush1.bf16.xpose.msra.mxu0 0
        %861 = vmatprep.subr.bf16.mxu0 0
        %862 = vmatpush1.bf16.xpose.msra.mxu0 0
        %863 = vmatprep.subr.bf16.mxu0 0
        %864 = vmatpush1.bf16.xpose.msra.mxu0 0
        %865 = vmatprep.subr.bf16.mxu0 0
        %866 = vmatpush1.bf16.xpose.msra.mxu0 0
        %867 = vmatprep.subr.bf16.mxu0 0
        %868 = vmatpush1.bf16.xpose.msra.mxu0 0
        %869 = vmatprep.subr.bf16.mxu0 0
        %870 = vmatpush1.bf16.xpose.msra.mxu0 0
        %871 = vmatprep.mubr.bf16.mxu0 0
        %872 = vmatmul.mubr.bf16.gmra.mrb[0].mxu0 %v834
        %v873 = vpop.f32.mrb[0].mxu0
        %v874 = vadd.f32 0.0, %v873
        %v875 = vpop.f32.mrb[0].mxu0
        %v876 = vpop.f32.mrb[0].mxu0
        %v877 = vpop.f32.mrb[0].mxu0
        %878 = vdwg.mxu0
        %v879 = vld [vmem:[%s484] sm:$0xff]
        %vm880 = vcmp.eq.s32.totalorder %v879, 0
        %v881 = vsel %vm880, 1, 0
        %vm882 = vcmp.eq.s32.totalorder %v881, 1
        %v883 = vsel %vm882, -1e+20, %v736
        %v884 = vsel %vm882, -1e+20, %v782
        %v885 = vsel %vm882, -1e+20, %v828
        %v886 = vsel %vm882, -1e+20, %v874
        %v887 = vsel %vm493, %v883, -inf
        %888 = vmax.xlane.f32.xlu0 %v887
        %v889 = vpop.xlane.xlu0 %888
        %v890 = vsel %vm493, %v884, -inf
        %891 = vmax.xlane.f32.xlu0 %v890
        %v892 = vpop.xlane.xlu0 %891
        %v893 = vsel %vm493, %v885, -inf
        %894 = vmax.xlane.f32.xlu0 %v893
        %v895 = vpop.xlane.xlu0 %894
        %v896 = vsel %vm493, %v886, -inf
        %897 = vmax.xlane.f32.xlu0 %v896
        %v898 = vpop.xlane.xlu0 %897
        %v899 = vsub.f32 %v883, %v889
        %v900 = vsub.f32 %v884, %v892
        %v901 = vsub.f32 %v885, %v895
        %v902 = vsub.f32 %v886, %v898
        %v903 = vmul.f32 %v899, 1.442695
        %v904 = vpow.pop %v903
        %v905 = vmul.f32 %v900, 1.442695
        %v906 = vpow.pop %v905
        %v907 = vmul.f32 %v901, 1.442695
        %v908 = vpow.pop %v907
        %v909 = vmul.f32 %v902, 1.442695
        %v910 = vpow.pop %v909
        %v911 = vsel %vm493, %v904, 0.0
        %912 = vadd.xlane.f32.xlu0 %v911
        %v913 = vpop.xlane.xlu0 %912
        %v914 = vsel %vm493, %v906, 0.0
        %915 = vadd.xlane.f32.xlu0 %v914
        %v916 = vpop.xlane.xlu0 %915
        %v917 = vsel %vm493, %v908, 0.0
        %918 = vadd.xlane.f32.xlu0 %v917
        %v919 = vpop.xlane.xlu0 %918
        %v920 = vsel %vm493, %v910, 0.0
        %921 = vadd.xlane.f32.xlu0 %v920
        %v922 = vpop.xlane.xlu0 %921
        %v923 = vrcp.pop %v913
        %v924 = vrcp.pop %v916
        %v925 = vrcp.pop %v919
        %v926 = vrcp.pop %v922
        %v927 = vmul.f32 %v904, %v923
        %v928 = vmul.f32 %v906, %v924
        %v929 = vmul.f32 %v908, %v925
        %v930 = vmul.f32 %v910, %v926
        %v931 = vpack.c.bf16 %v927, %v927
        %v932 = vpack.c.bf16 %v928, %v928
        %v933 = vpack.c.bf16 %v929, %v929
        %v934 = vpack.c.bf16 %v930, %v930
        %v936 = vsel %vm493, %v931, 0
        %v939 = vsel %vm500, %v691, 0
        %941 = vmatprep.subr.bf16.mxu0 0
        %942 = vmatpush1.bf16.msra.mxu0 %v939
        %943 = vmatprep.subr.bf16.mxu0 0
        %944 = vmatpush1.bf16.msra.mxu0 0
        %945 = vmatprep.subr.bf16.mxu0 0
        %946 = vmatpush1.bf16.msra.mxu0 0
        %947 = vmatprep.subr.bf16.mxu0 0
        %948 = vmatpush1.bf16.msra.mxu0 0
        %949 = vmatprep.subr.bf16.mxu0 0
        %950 = vmatpush1.bf16.msra.mxu0 0
        %951 = vmatprep.subr.bf16.mxu0 0
        %952 = vmatpush1.bf16.msra.mxu0 0
        %953 = vmatprep.subr.bf16.mxu0 0
        %954 = vmatpush1.bf16.msra.mxu0 0
        %955 = vmatprep.subr.bf16.mxu0 0
        %956 = vmatpush1.bf16.msra.mxu0 0
        %957 = vmatprep.subr.bf16.mxu0 0
        %958 = vmatpush1.bf16.msra.mxu0 0
        %959 = vmatprep.subr.bf16.mxu0 0
        %960 = vmatpush1.bf16.msra.mxu0 0
        %961 = vmatprep.subr.bf16.mxu0 0
        %962 = vmatpush1.bf16.msra.mxu0 0
        %963 = vmatprep.subr.bf16.mxu0 0
        %964 = vmatpush1.bf16.msra.mxu0 0
        %965 = vmatprep.subr.bf16.mxu0 0
        %966 = vmatpush1.bf16.msra.mxu0 0
        %967 = vmatprep.subr.bf16.mxu0 0
        %968 = vmatpush1.bf16.msra.mxu0 0
        %969 = vmatprep.subr.bf16.mxu0 0
        %970 = vmatpush1.bf16.msra.mxu0 0
        %971 = vmatprep.subr.bf16.mxu0 0
        %972 = vmatpush1.bf16.msra.mxu0 0
        %973 = vmatprep.mubr.bf16.mxu0 0
        %974 = vmatmul.mubr.bf16.gmra.mrb[0].mxu0 %v936
        %v975 = vpop.f32.mrb[0].mxu0
        %v976 = vadd.f32 0.0, %v975
        %v977 = vpop.f32.mrb[0].mxu0
        %v978 = vpop.f32.mrb[0].mxu0
        %v979 = vpop.f32.mrb[0].mxu0
        %980 = vdwg.mxu0
        %v982 = vsel %vm493, %v932, 0
        %v985 = vsel %vm500, %v692, 0
        %987 = vmatprep.subr.bf16.mxu0 0
        %988 = vmatpush1.bf16.msra.mxu0 %v985
        %989 = vmatprep.subr.bf16.mxu0 0
        %990 = vmatpush1.bf16.msra.mxu0 0
        %991 = vmatprep.subr.bf16.mxu0 0
        %992 = vmatpush1.bf16.msra.mxu0 0
        %993 = vmatprep.subr.bf16.mxu0 0
        %994 = vmatpush1.bf16.msra.mxu0 0
        %995 = vmatprep.subr.bf16.mxu0 0
        %996 = vmatpush1.bf16.msra.mxu0 0
        %997 = vmatprep.subr.bf16.mxu0 0
        %998 = vmatpush1.bf16.msra.mxu0 0
        %999 = vmatprep.subr.bf16.mxu0 0
        %1000 = vmatpush1.bf16.msra.mxu0 0
        %1001 = vmatprep.subr.bf16.mxu0 0
        %1002 = vmatpush1.bf16.msra.mxu0 0
        %1003 = vmatprep.subr.bf16.mxu0 0
        %1004 = vmatpush1.bf16.msra.mxu0 0
        %1005 = vmatprep.subr.bf16.mxu0 0
        %1006 = vmatpush1.bf16.msra.mxu0 0
        %1007 = vmatprep.subr.bf16.mxu0 0
        %1008 = vmatpush1.bf16.msra.mxu0 0
        %1009 = vmatprep.subr.bf16.mxu0 0
        %1010 = vmatpush1.bf16.msra.mxu0 0
        %1011 = vmatprep.subr.bf16.mxu0 0
        %1012 = vmatpush1.bf16.msra.mxu0 0
        %1013 = vmatprep.subr.bf16.mxu0 0
        %1014 = vmatpush1.bf16.msra.mxu0 0
        %1015 = vmatprep.subr.bf16.mxu0 0
        %1016 = vmatpush1.bf16.msra.mxu0 0
        %1017 = vmatprep.subr.bf16.mxu0 0
        %1018 = vmatpush1.bf16.msra.mxu0 0
        %1019 = vmatprep.mubr.bf16.mxu0 0
        %1020 = vmatmul.mubr.bf16.gmra.mrb[0].mxu0 %v982
        %v1021 = vpop.f32.mrb[0].mxu0
        %v1022 = vadd.f32 0.0, %v1021
        %v1023 = vpop.f32.mrb[0].mxu0
        %v1024 = vpop.f32.mrb[0].mxu0
        %v1025 = vpop.f32.mrb[0].mxu0
        %1026 = vdwg.mxu0
        %v1028 = vsel %vm493, %v933, 0
        %v1031 = vsel %vm500, %v693, 0
        %1033 = vmatprep.subr.bf16.mxu0 0
        %1034 = vmatpush1.bf16.msra.mxu0 %v1031
        %1035 = vmatprep.subr.bf16.mxu0 0
        %1036 = vmatpush1.bf16.msra.mxu0 0
        %1037 = vmatprep.subr.bf16.mxu0 0
        %1038 = vmatpush1.bf16.msra.mxu0 0
        %1039 = vmatprep.subr.bf16.mxu0 0
        %1040 = vmatpush1.bf16.msra.mxu0 0
        %1041 = vmatprep.subr.bf16.mxu0 0
        %1042 = vmatpush1.bf16.msra.mxu0 0
        %1043 = vmatprep.subr.bf16.mxu0 0
        %1044 = vmatpush1.bf16.msra.mxu0 0
        %1045 = vmatprep.subr.bf16.mxu0 0
        %1046 = vmatpush1.bf16.msra.mxu0 0
        %1047 = vmatprep.subr.bf16.mxu0 0
        %1048 = vmatpush1.bf16.msra.mxu0 0
        %1049 = vmatprep.subr.bf16.mxu0 0
        %1050 = vmatpush1.bf16.msra.mxu0 0
        %1051 = vmatprep.subr.bf16.mxu0 0
        %1052 = vmatpush1.bf16.msra.mxu0 0
        %1053 = vmatprep.subr.bf16.mxu0 0
        %1054 = vmatpush1.bf16.msra.mxu0 0
        %1055 = vmatprep.subr.bf16.mxu0 0
        %1056 = vmatpush1.bf16.msra.mxu0 0
        %1057 = vmatprep.subr.bf16.mxu0 0
        %1058 = vmatpush1.bf16.msra.mxu0 0
        %1059 = vmatprep.subr.bf16.mxu0 0
        %1060 = vmatpush1.bf16.msra.mxu0 0
        %1061 = vmatprep.subr.bf16.mxu0 0
        %1062 = vmatpush1.bf16.msra.mxu0 0
        %1063 = vmatprep.subr.bf16.mxu0 0
        %1064 = vmatpush1.bf16.msra.mxu0 0
        %1065 = vmatprep.mubr.bf16.mxu0 0
        %1066 = vmatmul.mubr.bf16.gmra.mrb[0].mxu0 %v1028
        %v1067 = vpop.f32.mrb[0].mxu0
        %v1068 = vadd.f32 0.0, %v1067
        %v1069 = vpop.f32.mrb[0].mxu0
        %v1070 = vpop.f32.mrb[0].mxu0
        %v1071 = vpop.f32.mrb[0].mxu0
        %1072 = vdwg.mxu0
        %v1074 = vsel %vm493, %v934, 0
        %v1077 = vsel %vm500, %v694, 0
        %1079 = vmatprep.subr.bf16.mxu0 0
        %1080 = vmatpush1.bf16.msra.mxu0 %v1077
        %1081 = vmatprep.subr.bf16.mxu0 0
        %1082 = vmatpush1.bf16.msra.mxu0 0
        %1083 = vmatprep.subr.bf16.mxu0 0
        %1084 = vmatpush1.bf16.msra.mxu0 0
        %1085 = vmatprep.subr.bf16.mxu0 0
        %1086 = vmatpush1.bf16.msra.mxu0 0
        %1087 = vmatprep.subr.bf16.mxu0 0
        %1088 = vmatpush1.bf16.msra.mxu0 0
        %1089 = vmatprep.subr.bf16.mxu0 0
        %1090 = vmatpush1.bf16.msra.mxu0 0
        %1091 = vmatprep.subr.bf16.mxu0 0
        %1092 = vmatpush1.bf16.msra.mxu0 0
        %1093 = vmatprep.subr.bf16.mxu0 0
        %1094 = vmatpush1.bf16.msra.mxu0 0
        %1095 = vmatprep.subr.bf16.mxu0 0
        %1096 = vmatpush1.bf16.msra.mxu0 0
        %1097 = vmatprep.subr.bf16.mxu0 0
        %1098 = vmatpush1.bf16.msra.mxu0 0
        %1099 = vmatprep.subr.bf16.mxu0 0
        %1100 = vmatpush1.bf16.msra.mxu0 0
        %1101 = vmatprep.subr.bf16.mxu0 0
        %1102 = vmatpush1.bf16.msra.mxu0 0
        %1103 = vmatprep.subr.bf16.mxu0 0
        %1104 = vmatpush1.bf16.msra.mxu0 0
        %1105 = vmatprep.subr.bf16.mxu0 0
        %1106 = vmatpush1.bf16.msra.mxu0 0
        %1107 = vmatprep.subr.bf16.mxu0 0
        %1108 = vmatpush1.bf16.msra.mxu0 0
        %1109 = vmatprep.subr.bf16.mxu0 0
        %1110 = vmatpush1.bf16.msra.mxu0 0
        %1111 = vmatprep.mubr.bf16.mxu0 0
        %1112 = vmatmul.mubr.bf16.gmra.mrb[0].mxu0 %v1074
        %v1113 = vpop.f32.mrb[0].mxu0
        %v1114 = vadd.f32 0.0, %v1113
        %v1115 = vpop.f32.mrb[0].mxu0
        %v1116 = vpop.f32.mrb[0].mxu0
        %v1117 = vpop.f32.mrb[0].mxu0
        %1118 = vdwg.mxu0
        %v1119 = vld [vmem:[%s8] sm:$0x1]
        %v1121 = vlaneseq
        %v1122 = vshrl.u32 %v1121, 7
        %v1123 = vsub.s32 0, %v1122
        %v1124 = vrot.slane %v1119, %v1123
        %v1126 = vpack.c.bf16 %v976, %v976
        %v1127 = vld [vmem:[#allocation11] sm:$0xf]
        %v1129 = vsel %vm493, %v1126, 0
        %v1132 = vsel %vm500, %v1127, 0
        %1134 = vmatprep.subr.bf16.mxu0 0
        %1135 = vmatpush1.bf16.msra.mxu0 %v1132
        %1136 = vmatprep.subr.bf16.mxu0 0
        %1137 = vmatpush1.bf16.msra.mxu0 0
        %1138 = vmatprep.subr.bf16.mxu0 0
        %1139 = vmatpush1.bf16.msra.mxu0 0
        %1140 = vmatprep.subr.bf16.mxu0 0
        %1141 = vmatpush1.bf16.msra.mxu0 0
        %1142 = vmatprep.subr.bf16.mxu0 0
        %1143 = vmatpush1.bf16.msra.mxu0 0
        %1144 = vmatprep.subr.bf16.mxu0 0
        %1145 = vmatpush1.bf16.msra.mxu0 0
        %1146 = vmatprep.subr.bf16.mxu0 0
        %1147 = vmatpush1.bf16.msra.mxu0 0
        %1148 = vmatprep.subr.bf16.mxu0 0
        %1149 = vmatpush1.bf16.msra.mxu0 0
        %1150 = vmatprep.subr.bf16.mxu0 0
        %1151 = vmatpush1.bf16.msra.mxu0 0
        %1152 = vmatprep.subr.bf16.mxu0 0
        %1153 = vmatpush1.bf16.msra.mxu0 0
        %1154 = vmatprep.subr.bf16.mxu0 0
        %1155 = vmatpush1.bf16.msra.mxu0 0
        %1156 = vmatprep.subr.bf16.mxu0 0
        %1157 = vmatpush1.bf16.msra.mxu0 0
        %1158 = vmatprep.subr.bf16.mxu0 0
        %1159 = vmatpush1.bf16.msra.mxu0 0
        %1160 = vmatprep.subr.bf16.mxu0 0
        %1161 = vmatpush1.bf16.msra.mxu0 0
        %1162 = vmatprep.subr.bf16.mxu0 0
        %1163 = vmatpush1.bf16.msra.mxu0 0
        %1164 = vmatprep.subr.bf16.mxu0 0
        %1165 = vmatpush1.bf16.msra.mxu0 0
        %1166 = vmatprep.mubr.bf16.mxu0 0
        %1167 = vmatmul.mubr.bf16.gmra.mrb[0].mxu0 %v1129
        %v1168 = vpop.f32.mrb[0].mxu0
        %v1169 = vadd.f32 0.0, %v1168
        %v1170 = vpop.f32.mrb[0].mxu0
        %v1171 = vpop.f32.mrb[0].mxu0
        %v1172 = vpop.f32.mrb[0].mxu0
        %1173 = vdwg.mxu0
        %v1174 = vadd.f32 %v1124, %v1169
        %v1175 = vpack.c.bf16 %v1022, %v1022
        %s1176 = scalar_lea.vmem [#allocation11], 4
        %v1177 = vld [vmem:[%s1176] sm:$0xf]
        %v1179 = vsel %vm493, %v1175, 0
        %v1182 = vsel %vm500, %v1177, 0
        %1184 = vmatprep.subr.bf16.mxu0 0
        %1185 = vmatpush1.bf16.msra.mxu0 %v1182
        %1186 = vmatprep.subr.bf16.mxu0 0
        %1187 = vmatpush1.bf16.msra.mxu0 0
        %1188 = vmatprep.subr.bf16.mxu0 0
        %1189 = vmatpush1.bf16.msra.mxu0 0
        %1190 = vmatprep.subr.bf16.mxu0 0
        %1191 = vmatpush1.bf16.msra.mxu0 0
        %1192 = vmatprep.subr.bf16.mxu0 0
        %1193 = vmatpush1.bf16.msra.mxu0 0
        %1194 = vmatprep.subr.bf16.mxu0 0
        %1195 = vmatpush1.bf16.msra.mxu0 0
        %1196 = vmatprep.subr.bf16.mxu0 0
        %1197 = vmatpush1.bf16.msra.mxu0 0
        %1198 = vmatprep.subr.bf16.mxu0 0
        %1199 = vmatpush1.bf16.msra.mxu0 0
        %1200 = vmatprep.subr.bf16.mxu0 0
        %1201 = vmatpush1.bf16.msra.mxu0 0
        %1202 = vmatprep.subr.bf16.mxu0 0
        %1203 = vmatpush1.bf16.msra.mxu0 0
        %1204 = vmatprep.subr.bf16.mxu0 0
        %1205 = vmatpush1.bf16.msra.mxu0 0
        %1206 = vmatprep.subr.bf16.mxu0 0
        %1207 = vmatpush1.bf16.msra.mxu0 0
        %1208 = vmatprep.subr.bf16.mxu0 0
        %1209 = vmatpush1.bf16.msra.mxu0 0
        %1210 = vmatprep.subr.bf16.mxu0 0
        %1211 = vmatpush1.bf16.msra.mxu0 0
        %1212 = vmatprep.subr.bf16.mxu0 0
        %1213 = vmatpush1.bf16.msra.mxu0 0
        %1214 = vmatprep.subr.bf16.mxu0 0
        %1215 = vmatpush1.bf16.msra.mxu0 0
        %1216 = vmatprep.mubr.bf16.mxu0 0
        %1217 = vmatmul.mubr.bf16.gmra.mrb[0].mxu0 %v1179
        %v1218 = vpop.f32.mrb[0].mxu0
        %v1219 = vadd.f32 0.0, %v1218
        %v1220 = vpop.f32.mrb[0].mxu0
        %v1221 = vpop.f32.mrb[0].mxu0
        %v1222 = vpop.f32.mrb[0].mxu0
        %1223 = vdwg.mxu0
        %v1224 = vadd.f32 %v1174, %v1219
        %v1225 = vpack.c.bf16 %v1068, %v1068
        %s1226 = scalar_lea.vmem [#allocation11], 8
        %v1227 = vld [vmem:[%s1226] sm:$0xf]
        %v1229 = vsel %vm493, %v1225, 0
        %v1232 = vsel %vm500, %v1227, 0
        %1234 = vmatprep.subr.bf16.mxu0 0
        %1235 = vmatpush1.bf16.msra.mxu0 %v1232
        %1236 = vmatprep.subr.bf16.mxu0 0
        %1237 = vmatpush1.bf16.msra.mxu0 0
        %1238 = vmatprep.subr.bf16.mxu0 0
        %1239 = vmatpush1.bf16.msra.mxu0 0
        %1240 = vmatprep.subr.bf16.mxu0 0
        %1241 = vmatpush1.bf16.msra.mxu0 0
        %1242 = vmatprep.subr.bf16.mxu0 0
        %1243 = vmatpush1.bf16.msra.mxu0 0
        %1244 = vmatprep.subr.bf16.mxu0 0
        %1245 = vmatpush1.bf16.msra.mxu0 0
        %1246 = vmatprep.subr.bf16.mxu0 0
        %1247 = vmatpush1.bf16.msra.mxu0 0
        %1248 = vmatprep.subr.bf16.mxu0 0
        %1249 = vmatpush1.bf16.msra.mxu0 0
        %1250 = vmatprep.subr.bf16.mxu0 0
        %1251 = vmatpush1.bf16.msra.mxu0 0
        %1252 = vmatprep.subr.bf16.mxu0 0
        %1253 = vmatpush1.bf16.msra.mxu0 0
        %1254 = vmatprep.subr.bf16.mxu0 0
        %1255 = vmatpush1.bf16.msra.mxu0 0
        %1256 = vmatprep.subr.bf16.mxu0 0
        %1257 = vmatpush1.bf16.msra.mxu0 0
        %1258 = vmatprep.subr.bf16.mxu0 0
        %1259 = vmatpush1.bf16.msra.mxu0 0
        %1260 = vmatprep.subr.bf16.mxu0 0
        %1261 = vmatpush1.bf16.msra.mxu0 0
        %1262 = vmatprep.subr.bf16.mxu0 0
        %1263 = vmatpush1.bf16.msra.mxu0 0
        %1264 = vmatprep.subr.bf16.mxu0 0
        %1265 = vmatpush1.bf16.msra.mxu0 0
        %1266 = vmatprep.mubr.bf16.mxu0 0
        %1267 = vmatmul.mubr.bf16.gmra.mrb[0].mxu0 %v1229
        %v1268 = vpop.f32.mrb[0].mxu0
        %v1269 = vadd.f32 0.0, %v1268
        %v1270 = vpop.f32.mrb[0].mxu0
        %v1271 = vpop.f32.mrb[0].mxu0
        %v1272 = vpop.f32.mrb[0].mxu0
        %1273 = vdwg.mxu0
        %v1274 = vadd.f32 %v1224, %v1269
        %v1275 = vpack.c.bf16 %v1114, %v1114
        %s1276 = scalar_lea.vmem [#allocation11], 12
        %v1277 = vld [vmem:[%s1276] sm:$0xf]
        %v1279 = vsel %vm493, %v1275, 0
        %v1282 = vsel %vm500, %v1277, 0
        %1284 = vmatprep.subr.bf16.mxu0 0
        %1285 = vmatpush1.bf16.msra.mxu0 %v1282
        %1286 = vmatprep.subr.bf16.mxu0 0
        %1287 = vmatpush1.bf16.msra.mxu0 0
        %1288 = vmatprep.subr.bf16.mxu0 0
        %1289 = vmatpush1.bf16.msra.mxu0 0
        %1290 = vmatprep.subr.bf16.mxu0 0
        %1291 = vmatpush1.bf16.msra.mxu0 0
        %1292 = vmatprep.subr.bf16.mxu0 0
        %1293 = vmatpush1.bf16.msra.mxu0 0
        %1294 = vmatprep.subr.bf16.mxu0 0
        %1295 = vmatpush1.bf16.msra.mxu0 0
        %1296 = vmatprep.subr.bf16.mxu0 0
        %1297 = vmatpush1.bf16.msra.mxu0 0
        %1298 = vmatprep.subr.bf16.mxu0 0
        %1299 = vmatpush1.bf16.msra.mxu0 0
        %1300 = vmatprep.subr.bf16.mxu0 0
        %1301 = vmatpush1.bf16.msra.mxu0 0
        %1302 = vmatprep.subr.bf16.mxu0 0
        %1303 = vmatpush1.bf16.msra.mxu0 0
        %1304 = vmatprep.subr.bf16.mxu0 0
        %1305 = vmatpush1.bf16.msra.mxu0 0
        %1306 = vmatprep.subr.bf16.mxu0 0
        %1307 = vmatpush1.bf16.msra.mxu0 0
        %1308 = vmatprep.subr.bf16.mxu0 0
        %1309 = vmatpush1.bf16.msra.mxu0 0
        %1310 = vmatprep.subr.bf16.mxu0 0
        %1311 = vmatpush1.bf16.msra.mxu0 0
        %1312 = vmatprep.subr.bf16.mxu0 0
        %1313 = vmatpush1.bf16.msra.mxu0 0
        %1314 = vmatprep.subr.bf16.mxu0 0
        %1315 = vmatpush1.bf16.msra.mxu0 0
        %1316 = vmatprep.mubr.bf16.mxu0 0
        %1317 = vmatmul.mubr.bf16.gmra.mrb[0].mxu0 %v1279
        %v1318 = vpop.f32.mrb[0].mxu0
        %v1319 = vadd.f32 0.0, %v1318
        %v1320 = vpop.f32.mrb[0].mxu0
        %v1321 = vpop.f32.mrb[0].mxu0
        %v1322 = vpop.f32.mrb[0].mxu0
        %1323 = vdwg.mxu0
        %v1324 = vadd.f32 %v1274, %v1319
        %vm1325 = vcmask 261120
        %1326 = vst.msk [vmem:[%s480] sm:$0xff] %vm1325, %v1324
        %s1327 = sand.u32 %s248, 1
        %s1328 = scalar_lea.sflag [#allocation4], %s1327
        %s1329 = sand.u32 %s248, 1
        %s1330 = smul.addr %s1329, 8
        %s1331 = scalar_lea.vmem [#allocation13], %s1330
        // Predicated region
        $region81: #{tpu_custom_call.1} parent=55 // pred_check
          %p1332 = pneg %p258
        $region82: #{tpu_custom_call.1} parent=55 // pred_check_branch
          %1334 = sbr.rel (%p1332) target = $region84
        $region83: #{tpu_custom_call.1} parent=55 // pred_region
          %s1336 = ssub.s32 128, 128
          %1337 = vsyncadd %s1328, %s1336
          %s1338 = smul.addr %s31, 128
          %s1339 = scalar_lea.hbm %s9, %s1338
          %s1341 = sshll.u32 %s1331, 4
          %s1342 = int_to_ptr.vmem [resolvable:$true] %s1341
          %1344 = dma.vmem_to_hbm [thread:$0]  %s1342, 128, %s1339, %s1328
        $region84: #{tpu_custom_call.1} parent=55 // pred_fallthru
          _
      $region56: #{tpu_custom_call.1} parent=5 // pred_fallthru
        _
      %p1345 = scmp.le.s32.totalorder 2, %s26
      // Predicated region
      $region85: #{tpu_custom_call.1} parent=5 // pred_check
        %p1346 = pneg %p1345
      $region86: #{tpu_custom_call.1} parent=5 // pred_check_branch
        %1348 = sbr.rel (%p1346) target = $region88
      $region87: #{tpu_custom_call.1} parent=5 // pred_region
        %s1349 = ssub.s32 %s26, 2
        // Predicated region
        $region89: #{tpu_custom_call.1} parent=87 // pred_check
          %p1350 = pneg %p264
        $region90: #{tpu_custom_call.1} parent=87 // pred_check_branch
          %1352 = sbr.rel (%p1350) target = $region92
        $region91: #{tpu_custom_call.1} parent=87 // pred_region
          %s1353 = sand.u32 %s249, 1
          %s1354 = scalar_lea.sflag [#allocation4], %s1353
          %s1355 = sand.u32 %s249, 1
          %s1356 = smul.addr %s1355, 8
          %s1357 = scalar_lea.vmem [#allocation13], %s1356
          %1358 = dma.done %s1354, 128
        $region92: #{tpu_custom_call.1} parent=87 // pred_fallthru
          _
      $region88: #{tpu_custom_call.1} parent=5 // pred_fallthru
        _
    $region6: #{tpu_custom_call.1} parent=1 // loop_footer
      %s30 = sadd.s32 1, %s26
    $region7: #{tpu_custom_call.1} parent=1 // loop_footer_branch
      %25 = sbr.rel target = $region3
    $region8: #{tpu_custom_call.1} parent=1 // loop_exit
      _
    %1359 = vsyncpa [#allocation3], 1
    %s1360 = scalar_lea.sflag [#allocation3], 1
    %1361 = vsyncpa %s1360, 1
    %1362 = vsyncpa [#allocation6], 1
    %s1363 = scalar_lea.sflag [#allocation6], 1
    %1364 = vsyncpa %s1363, 1
    %1365 = vsyncpa [#allocation9], 1
    %1366 = vsyncpa [#allocation12], 1
    %1367 = vsyncpa [#allocation4], 1
    %s1368 = scalar_lea.sflag [#allocation4], 1
    %1369 = vsyncpa %s1368, 1

</llo_original>
